<compile_context>
chip_gen: v6e
topology: v6e:2x2x1
jax: 0.10.0
libtpu: 0.0.40
codegen_flags: <defaults>
</compile_context>

<pallas_src>
import math

import jax
import jax.numpy as jnp
from jax.experimental import pallas as pl
from jax.experimental.pallas import tpu as pltpu


# -----------------------------------------------------------------------------
# helpers
# -----------------------------------------------------------------------------
def _round_up(x, m):
    return ((x + m - 1) // m) * m


def _default_act_dtype():
    """bf16 activation math on chips with a bf16 VPU/EUP (v6e, v7x), else f32."""
    try:
        kind = jax.devices()[0].device_kind.lower()
    except Exception:
        return jnp.float32
    if ("v6" in kind) or ("v7" in kind) or ("7x" in kind):
        return jnp.bfloat16
    return jnp.float32


# -----------------------------------------------------------------------------
# Pallas kernel: full SIREN net over a tile of pixels (feature-major layout)
# -----------------------------------------------------------------------------
def make_siren_kernel(num_layers, image_height, image_width, tile_cols,
                      act_dtype, matmul_dtype):
    """Kernel body.  Ref order (positional):
         w_0 (Dh, 2) f32, b_0 (Dh, 1) f32,
         [w_l (Dh, Dh) matmul_dtype, b_l (Dh, 1) act_dtype  for l in 1..L-1],
         w_last (Do, Dh) matmul_dtype, b_last (Do, 1) f32,
         out_ref (Do, TM) f32
    w0 (the sine frequency) and the FiLM modulation are already folded in."""
    n_inner = num_layers - 1
    # torch.linspace(-1, 1, steps=n): value_i = -1 + i * 2/(n-1)
    y_step = 2.0 / (image_height - 1) if image_height > 1 else 0.0
    x_step = 2.0 / (image_width - 1) if image_width > 1 else 0.0
    w_f = float(image_width)
    inv_w = 1.0 / w_f

    def kernel(*refs):
        w0_ref, b0_ref = refs[0], refs[1]
        idx = 2
        inner = []
        for _ in range(n_inner):
            inner.append((refs[idx], refs[idx + 1]))
            idx += 2
        wlast_ref, blast_ref = refs[idx], refs[idx + 1]
        out_ref = refs[idx + 2]

        # ---- coordinates generated on the VPU (no HBM coordinate stream) ----
        # row/col via f32 reciprocal-multiply + floor (no integer divide on
        # TPU); the where() fix-up makes the decomposition exact for N < 2^24.
        start = (pl.program_id(0) * tile_cols).astype(jnp.float32)
        iota = jax.lax.broadcasted_iota(jnp.int32, (1, tile_cols), 1)
        pf = start + iota.astype(jnp.float32)                     # pixel index
        row = jnp.floor(pf * inv_w)
        col = pf - row * w_f
        over = col >= w_f
        row = jnp.where(over, row + 1.0, row)
        col = jnp.where(over, col - w_f, col)
        under = col < 0.0
        row = jnp.where(under, row - 1.0, row)
        col = jnp.where(under, col + w_f, col)
        # NOTE: padded tail pixels (p >= H*W) give row >= H, so y leaves
        # [-1, 1].  Those columns are finite, never read back (the wrapper
        # slices [:, :N]) and must not be reused.
        y = -1.0 + row * y_step                                   # (1, TM) f32
        x = -1.0 + col * x_step                                   # (1, TM) f32

        # ---- first Siren layer: dim_in == 2 -> broadcast affine, f32 for
        #      coordinate accuracy (one layer; hidden under the sine work) ----
        # TODO(synk): if profiling shows this VALU-bound, pack [y;x;1;0..] into
        # an (8, TM) rhs and run the first layer on the (mostly idle) MXU.
        wf0 = w0_ref[...]                                         # (Dh, 2) f32
        arg0 = wf0[:, 0:1] * y + wf0[:, 1:2] * x + b0_ref[...]    # (Dh, TM)
        act = jnp.sin(arg0).astype(act_dtype)

        # ---- remaining hidden Siren layers: bf16 MXU matmul, f32 accumulate,
        #      sine/bias math in act_dtype (bf16 on v6e/v7x, f32 on v5e) ----
        for w_ref, b_ref in inner:
            rhs = act if act.dtype == matmul_dtype else act.astype(matmul_dtype)
            h = jnp.dot(w_ref[...], rhs, preferred_element_type=jnp.float32)
            act = jnp.sin(h.astype(act_dtype) + b_ref[...])       # (Dh, TM)

        # ---- final linear layer (Identity activation) ----
        rhs = act if act.dtype == matmul_dtype else act.astype(matmul_dtype)
        out = jnp.dot(wlast_ref[...], rhs,
                      preferred_element_type=jnp.float32) + blast_ref[...]
        out_ref[...] = out.astype(out_ref.dtype)                  # lane-dense

    return kernel


def siren_net_pallas(eff_w, eff_b, eff_last_w, last_b, image_height, image_width,
                     *, tile_cols=2048, matmul_dtype=jnp.bfloat16, act_dtype=None):
    """Run the (already w0/mod-folded) SIREN net; returns (dim_out, H*W) f32."""
    if act_dtype is None:
        act_dtype = _default_act_dtype()

    N = image_height * image_width
    dim_hidden = eff_w[0].shape[0]
    dim_out = eff_last_w.shape[0]
    num_layers = len(eff_w)

    # ---- zero-pad channel dims for clean (8,128) layouts / full MXU rows.
    # Exact: padded rows have zero weights and bias -> sin(0) = 0.
    dh = _round_up(dim_hidden, 128) if dim_hidden >= 128 else _round_up(dim_hidden, 8)
    do = _round_up(dim_out, 8)

    def pad2(a, r, c):
        return jnp.pad(a, ((0, r - a.shape[0]), (0, c - a.shape[1])))

    # Weights are cast ONCE here (outside the grid loop); first layer stays f32.
    inputs = [pad2(eff_w[0], dh, eff_w[0].shape[1]).astype(jnp.float32),
              pad2(eff_b[0].reshape(-1, 1), dh, 1).astype(jnp.float32)]
    for l in range(1, num_layers):
        inputs.append(pad2(eff_w[l], dh, dh).astype(matmul_dtype))
        inputs.append(pad2(eff_b[l].reshape(-1, 1), dh, 1).astype(act_dtype))
    inputs.append(pad2(eff_last_w, do, dh).astype(matmul_dtype))
    inputs.append(pad2(last_b.reshape(-1, 1), do, 1).astype(jnp.float32))

    # Whole-array resident in VMEM: fetched once, single copy (no per-step
    # pipelining / double buffering for the constant weights).
    in_specs = [pl.BlockSpec(memory_space=pltpu.MemorySpace.VMEM) for _ in inputs]

    # ---- pixel tile: lane-dense multiple of 128, large enough to amortize the
    # ~0.35us/step overhead, but shrunk so the "parallel" grid keeps >= 4 steps
    # (v7x megacore: 2 TensorCores) when the image allows it.
    tm = _round_up(min(tile_cols, _round_up(N, 128)), 128)
    while tm > 128 and -(-N // tm) < 4:
        tm = _round_up(tm // 2, 128)
    n_pad = _round_up(N, tm)
    grid = (n_pad // tm,)

    kernel = make_siren_kernel(num_layers, image_height, image_width, tm,
                               act_dtype, matmul_dtype)

    # Advisory cost estimate (the kernel is transcendental-heavy).
    flops = 2 * n_pad * (2 * dh + (num_layers - 1) * dh * dh + dh * do)
    transcendentals = n_pad * num_layers * dh
    weight_bytes = sum(int(a.size) * a.dtype.itemsize for a in inputs)
    cost = pl.CostEstimate(flops=int(flops), transcendentals=int(transcendentals),
                           bytes_accessed=int(weight_bytes + n_pad * do * 4))

    # Raise the scoped-VMEM limit only if the estimated footprint exceeds the
    # smallest default (v5e: 16 MiB).  Typical SIREN sizes fit comfortably.
    est = weight_bytes + 3 * dh * tm * 4 + 2 * do * tm * 4
    vmem_limit = int(min(2 * est, 48 * 1024 * 1024)) if 2 * est > 16 * 1024 * 1024 else None

    out = pl.pallas_call(
        kernel,
        out_shape=jax.ShapeDtypeStruct((do, n_pad), jnp.float32),
        grid=grid,
        in_specs=in_specs,
        out_specs=pl.BlockSpec((do, tm), lambda i: (0, i)),
        compiler_params=pltpu.CompilerParams(
            dimension_semantics=("parallel",),
            vmem_limit_bytes=vmem_limit),
        cost_estimate=cost,
    )(*inputs)

    return out[:dim_out, :N]                                      # (dim_out, H*W)


# -----------------------------------------------------------------------------
# Plain-JAX glue: parameter init, Modulator, w0/mod folding, wrapper forward
# -----------------------------------------------------------------------------
def init_siren_params(key, dim_in, dim_hidden, dim_out, num_layers,
                      w0=1.0, w0_initial=30.0, c=6.0):
    """Init matching SirenNet's uniform(-w_std, w_std); W is (out, in)."""
    layer_w, layer_b, w0s = [], [], []
    for ind in range(num_layers):
        is_first = ind == 0
        layer_w0 = w0_initial if is_first else w0
        layer_dim_in = dim_in if is_first else dim_hidden
        w_std = (1.0 / layer_dim_in) if is_first else math.sqrt(c / layer_dim_in) / layer_w0
        key, kw, kb = jax.random.split(key, 3)
        layer_w.append(jax.random.uniform(kw, (dim_hidden, layer_dim_in), jnp.float32,
                                          minval=-w_std, maxval=w_std))
        layer_b.append(jax.random.uniform(kb, (dim_hidden,), jnp.float32,
                                          minval=-w_std, maxval=w_std))
        w0s.append(layer_w0)
    w_std = math.sqrt(c / dim_hidden) / w0
    key, kw, kb = jax.random.split(key, 3)
    last_w = jax.random.uniform(kw, (dim_out, dim_hidden), jnp.float32,
                                minval=-w_std, maxval=w_std)
    last_b = jax.random.uniform(kb, (dim_out,), jnp.float32,
                                minval=-w_std, maxval=w_std)
    return layer_w, layer_b, last_w, last_b, w0s


def init_modulator_params(key, latent_dim, dim_hidden, num_layers):
    ws, bs = [], []
    for ind in range(num_layers):
        dim = latent_dim if ind == 0 else dim_hidden + latent_dim
        bound = 1.0 / math.sqrt(dim)
        key, kw, kb = jax.random.split(key, 3)
        ws.append(jax.random.uniform(kw, (dim_hidden, dim), jnp.float32,
                                     minval=-bound, maxval=bound))
        bs.append(jax.random.uniform(kb, (dim_hidden,), jnp.float32,
                                     minval=-bound, maxval=bound))
    return ws, bs


def modulator_forward(z, mod_ws, mod_bs):
    """Modulator.forward: Linear -> ReLU, concat with z between layers."""
    x = z
    hiddens = []
    for w, b in zip(mod_ws, mod_bs):
        x = jax.nn.relu(x @ w.T + b)
        hiddens.append(x)
        x = jnp.concatenate([x, z])
    return jnp.stack(hiddens)          # (num_layers, dim_hidden)


def fold_params(layer_w, layer_b, w0s, last_w, mods):
    """Fold sine frequency w0 and FiLM modulation into the weights."""
    eff_w, eff_b = [], []
    for l, (w, b, w0) in enumerate(zip(layer_w, layer_b, w0s)):
        we = w0 * w
        if mods is not None and l > 0:
            we = we * mods[l - 1][None, :]       # scale input columns by mod_{l-1}
        eff_w.append(we)
        eff_b.append(w0 * b)
    eff_last_w = last_w if mods is None else last_w * mods[-1][None, :]
    return eff_w, eff_b, eff_last_w


def siren_wrapper_forward(params, image_height, image_width, *, img=None, latent=None,
                          tile_cols=2048, matmul_dtype=jnp.bfloat16, act_dtype=None):
    layer_w, layer_b, last_w, last_b, w0s, mod_ws, mod_bs = params
    modulate = mod_ws is not None
    assert not (modulate ^ (latent is not None)), \
        "latent vector must be supplied iff latent_dim was passed in"

    mods = modulator_forward(latent, mod_ws, mod_bs) if modulate else None
    eff_w, eff_b, eff_last_w = fold_params(layer_w, layer_b, w0s, last_w, mods)

    out = siren_net_pallas(eff_w, eff_b, eff_last_w, last_b,
                           image_height, image_width, tile_cols=tile_cols,
                           matmul_dtype=matmul_dtype, act_dtype=act_dtype)  # (C, H*W)
    out = out.reshape(1, -1, image_height, image_width)   # '(h w) c -> () c h w'

    if img is not None:
        return jnp.mean((img - out) ** 2)   # F.mse_loss
    return out


# -----------------------------------------------------------------------------
# Pure-JAX references for correctness checks
# -----------------------------------------------------------------------------
def siren_wrapper_reference(params, image_height, image_width, *, latent=None):
    """Unfolded f32 reference with the original op order."""
    layer_w, layer_b, last_w, last_b, w0s, mod_ws, mod_bs = params
    mods = modulator_forward(latent, mod_ws, mod_bs) if mod_ws is not None else None
    ys = jnp.linspace(-1.0, 1.0, image_height)
    xs = jnp.linspace(-1.0, 1.0, image_width)
    gy, gx = jnp.meshgrid(ys, xs, indexing="ij")
    x = jnp.stack([gy, gx], axis=-1).reshape(-1, 2)
    for l, (w, b, w0) in enumerate(zip(layer_w, layer_b, w0s)):
        x = jnp.sin(w0 * (x @ w.T + b))
        if mods is not None:
            x = x * mods[l][None, :]
    out = x @ last_w.T + last_b
    return out.reshape(image_height, image_width, -1).transpose(2, 0, 1)[None]


def folded_net_reference(eff_w, eff_b, eff_last_w, last_b, image_height, image_width):
    """f32 forward of the already-folded net (for checking the bf16 path
    against the same rounded weights)."""
    ys = jnp.linspace(-1.0, 1.0, image_height)
    xs = jnp.linspace(-1.0, 1.0, image_width)
    gy, gx = jnp.meshgrid(ys, xs, indexing="ij")
    x = jnp.stack([gy, gx], axis=-1).reshape(-1, 2).astype(jnp.float32)
    for w, b in zip(eff_w, eff_b):
        x = jnp.sin(x @ w.astype(jnp.float32).T + b.astype(jnp.float32))
    out = x @ eff_last_w.astype(jnp.float32).T + last_b
    return out.T   # (dim_out, N)


# -----------------------------------------------------------------------------
if __name__ == "__main__":
    H, W = 16, 16                 # image_height, image_width -> N = 256 pixels
    dim_in = 2                    # (y, x) coordinates
    dim_hidden = 32
    dim_out = 3
    num_layers = 3
    latent_dim = 8

    key = jax.random.PRNGKey(0)
    k_siren, k_mod, k_lat, k_img = jax.random.split(key, 4)

    layer_w, layer_b, last_w, last_b, w0s = init_siren_params(
        k_siren, dim_in, dim_hidden, dim_out, num_layers)
    mod_ws, mod_bs = init_modulator_params(k_mod, latent_dim, dim_hidden, num_layers)
    params = (layer_w, layer_b, last_w, last_b, w0s, mod_ws, mod_bs)

    latent = jax.random.normal(k_lat, (latent_dim,), jnp.float32)
    img = jax.random.normal(k_img, (1, dim_out, H, W), jnp.float32)

    # 1) strict correctness: f32 kernel path vs unfolded pure-JAX reference
    out_f32 = siren_wrapper_forward(params, H, W, latent=latent,
                                    matmul_dtype=jnp.float32, act_dtype=jnp.float32)
    out_f32 = jax.block_until_ready(out_f32)
    assert out_f32.shape == (1, dim_out, H, W)
    ref = jax.block_until_ready(siren_wrapper_reference(params, H, W, latent=latent))
    err = float(jnp.max(jnp.abs(out_f32 - ref)))
    assert err < 5e-3, err

    # 2) default (performance) path: bf16 weights / bf16-or-f32 activation math
    out_fast = jax.block_until_ready(siren_wrapper_forward(params, H, W, latent=latent))
    assert out_fast.shape == (1, dim_out, H, W)
    assert bool(jnp.all(jnp.isfinite(out_fast)))
    # compare against a pure-JAX forward through the SAME rounded weights
    mods = modulator_forward(latent, mod_ws, mod_bs)
    eff_w, eff_b, eff_last_w = fold_params(layer_w, layer_b, w0s, last_w, mods)
    adt = _default_act_dtype()
    eff_w_r = [eff_w[0]] + [w.astype(jnp.bfloat16).astype(jnp.float32) for w in eff_w[1:]]
    eff_b_r = [eff_b[0]] + [b.astype(adt).astype(jnp.float32) for b in eff_b[1:]]
    eff_last_w_r = eff_last_w.astype(jnp.bfloat16).astype(jnp.float32)
    ref_fast = folded_net_reference(eff_w_r, eff_b_r, eff_last_w_r, last_b, H, W)
    ref_fast = ref_fast.reshape(1, dim_out, H, W)
    err_fast = float(jnp.max(jnp.abs(out_fast - ref_fast)))
    assert err_fast < 2e-1, err_fast     # loose: remaining diff is bf16 act/sin rounding

    # 3) loss path (img given) -> scalar MSE
    loss = jax.block_until_ready(siren_wrapper_forward(params, H, W, img=img, latent=latent))
    assert loss.shape == ()
    assert bool(jnp.isfinite(loss))

    # 4) unmodulated net (no latent), image generation
    params_nomod = (layer_w, layer_b, last_w, last_b, w0s, None, None)
    out_plain = jax.block_until_ready(siren_wrapper_forward(params_nomod, H, W))
    assert out_plain.shape == (1, dim_out, H, W)

    print("KERNEL_OK")
</pallas_src>

<mosaic_0001>
module attributes {stable_mosaic.version = 11 : i64} {
  func.func @kernel(%arg0: i32, %arg1: memref<32x2xf32, #tpu.memory_space<vmem>>, %arg2: memref<32x1xf32, #tpu.memory_space<vmem>>, %arg3: memref<32x32xf32, #tpu.memory_space<vmem>>, %arg4: memref<32x1xf32, #tpu.memory_space<vmem>>, %arg5: memref<32x32xf32, #tpu.memory_space<vmem>>, %arg6: memref<32x1xf32, #tpu.memory_space<vmem>>, %arg7: memref<8x32xf32, #tpu.memory_space<vmem>>, %arg8: memref<8x1xf32, #tpu.memory_space<vmem>>, %arg9: memref<8x128xf32, #tpu.memory_space<vmem>>) attributes {dimension_semantics = [#tpu.dimension_semantics<parallel>], iteration_bounds = array<i64: 2>, scalar_prefetch = 0 : i64, scratch_operands = 0 : i64, tpu.core_type = #tpu.core_type<tc>, window_params = [{pipeline_mode = #tpu.pipeline_mode<synchronous>, transform_indices = @transform_0, window_bounds = array<i64: 32, 2>}, {pipeline_mode = #tpu.pipeline_mode<synchronous>, transform_indices = @transform_1, window_bounds = array<i64: 32, 1>}, {pipeline_mode = #tpu.pipeline_mode<synchronous>, transform_indices = @transform_2, window_bounds = array<i64: 32, 32>}, {pipeline_mode = #tpu.pipeline_mode<synchronous>, transform_indices = @transform_3, window_bounds = array<i64: 32, 1>}, {pipeline_mode = #tpu.pipeline_mode<synchronous>, transform_indices = @transform_4, window_bounds = array<i64: 32, 32>}, {pipeline_mode = #tpu.pipeline_mode<synchronous>, transform_indices = @transform_5, window_bounds = array<i64: 32, 1>}, {pipeline_mode = #tpu.pipeline_mode<synchronous>, transform_indices = @transform_6, window_bounds = array<i64: 8, 32>}, {pipeline_mode = #tpu.pipeline_mode<synchronous>, transform_indices = @transform_7, window_bounds = array<i64: 8, 1>}, {transform_indices = @transform_8, window_bounds = array<i64: 8, 128>}]} {
    %c128_i32 = arith.constant 128 : i32
    %0 = arith.muli %arg0, %c128_i32 : i32
    %1 = arith.sitofp %0 : i32 to f32
    %2 = tpu.iota {dimensions = array<i32: 1>} : vector<1x128xi32>
    %3 = arith.sitofp %2 : vector<1x128xi32> to vector<1x128xf32>
    %4 = vector.broadcast %1 : f32 to vector<1x128xf32>
    %5 = arith.addf %4, %3 : vector<1x128xf32>
    %cst = arith.constant 6.250000e-02 : f32
    %6 = vector.broadcast %cst : f32 to vector<1x128xf32>
    %7 = arith.mulf %5, %6 : vector<1x128xf32>
    %8 = math.floor %7 : vector<1x128xf32>
    %cst_0 = arith.constant 1.600000e+01 : f32
    %9 = vector.broadcast %cst_0 : f32 to vector<1x128xf32>
    %10 = arith.mulf %8, %9 : vector<1x128xf32>
    %11 = arith.subf %5, %10 : vector<1x128xf32>
    %cst_1 = arith.constant 1.600000e+01 : f32
    %12 = vector.broadcast %cst_1 : f32 to vector<1x128xf32>
    %13 = arith.cmpf oge, %11, %12 : vector<1x128xf32>
    %cst_2 = arith.constant 1.000000e+00 : f32
    %14 = vector.broadcast %cst_2 : f32 to vector<1x128xf32>
    %15 = arith.addf %8, %14 : vector<1x128xf32>
    %16 = arith.select %13, %15, %8 : vector<1x128xi1>, vector<1x128xf32>
    %cst_3 = arith.constant 1.600000e+01 : f32
    %17 = vector.broadcast %cst_3 : f32 to vector<1x128xf32>
    %18 = arith.subf %11, %17 : vector<1x128xf32>
    %19 = arith.select %13, %18, %11 : vector<1x128xi1>, vector<1x128xf32>
    %cst_4 = arith.constant 0.000000e+00 : f32
    %20 = vector.broadcast %cst_4 : f32 to vector<1x128xf32>
    %21 = arith.cmpf olt, %19, %20 : vector<1x128xf32>
    %cst_5 = arith.constant 1.000000e+00 : f32
    %22 = vector.broadcast %cst_5 : f32 to vector<1x128xf32>
    %23 = arith.subf %16, %22 : vector<1x128xf32>
    %24 = arith.select %21, %23, %16 : vector<1x128xi1>, vector<1x128xf32>
    %cst_6 = arith.constant 1.600000e+01 : f32
    %25 = vector.broadcast %cst_6 : f32 to vector<1x128xf32>
    %26 = arith.addf %19, %25 : vector<1x128xf32>
    %27 = arith.select %21, %26, %19 : vector<1x128xi1>, vector<1x128xf32>
    %cst_7 = arith.constant 0.13333334 : f32
    %28 = vector.broadcast %cst_7 : f32 to vector<1x128xf32>
    %29 = arith.mulf %24, %28 : vector<1x128xf32>
    %cst_8 = arith.constant -1.000000e+00 : f32
    %30 = vector.broadcast %cst_8 : f32 to vector<1x128xf32>
    %31 = arith.addf %30, %29 : vector<1x128xf32>
    %cst_9 = arith.constant 0.13333334 : f32
    %32 = vector.broadcast %cst_9 : f32 to vector<1x128xf32>
    %33 = arith.mulf %27, %32 : vector<1x128xf32>
    %cst_10 = arith.constant -1.000000e+00 : f32
    %34 = vector.broadcast %cst_10 : f32 to vector<1x128xf32>
    %35 = arith.addf %34, %33 : vector<1x128xf32>
    %c0 = arith.constant 0 : index
    %c0_11 = arith.constant 0 : index
    %36 = vector.load %arg1[%c0, %c0_11] : memref<32x2xf32, #tpu.memory_space<vmem>>, vector<32x2xf32>
    %37 = vector.extract_strided_slice %36 {offsets = [0, 0], sizes = [32, 1], strides = [1, 1]} : vector<32x2xf32> to vector<32x1xf32>
    %38 = vector.broadcast %37 : vector<32x1xf32> to vector<32x128xf32>
    %39 = vector.broadcast %31 : vector<1x128xf32> to vector<32x128xf32>
    %40 = arith.mulf %38, %39 : vector<32x128xf32>
    %41 = vector.extract_strided_slice %36 {offsets = [0, 1], sizes = [32, 1], strides = [1, 1]} : vector<32x2xf32> to vector<32x1xf32>
    %42 = vector.broadcast %41 : vector<32x1xf32> to vector<32x128xf32>
    %43 = vector.broadcast %35 : vector<1x128xf32> to vector<32x128xf32>
    %44 = arith.mulf %42, %43 : vector<32x128xf32>
    %45 = arith.addf %40, %44 : vector<32x128xf32>
    %c0_12 = arith.constant 0 : index
    %c0_13 = arith.constant 0 : index
    %46 = vector.load %arg2[%c0_12, %c0_13] : memref<32x1xf32, #tpu.memory_space<vmem>>, vector<32x1xf32>
    %47 = vector.broadcast %46 : vector<32x1xf32> to vector<32x128xf32>
    %48 = arith.addf %45, %47 : vector<32x128xf32>
    %49 = math.sin %48 : vector<32x128xf32>
    %c0_14 = arith.constant 0 : index
    %c0_15 = arith.constant 0 : index
    %50 = vector.load %arg3[%c0_14, %c0_15] : memref<32x32xf32, #tpu.memory_space<vmem>>, vector<32x32xf32>
    %cst_16 = arith.constant dense<0.000000e+00> : vector<32x128xf32>
    %51 = tpu.matmul %50, %49, %cst_16 {dimension_numbers = #tpu.dot_dimension_numbers<[1], [0], [0], [1], [0, 0, 1, 1], [], []>} : vector<32x32xf32>, vector<32x128xf32>, vector<32x128xf32> -> vector<32x128xf32>
    %c0_17 = arith.constant 0 : index
    %c0_18 = arith.constant 0 : index
    %52 = vector.load %arg4[%c0_17, %c0_18] : memref<32x1xf32, #tpu.memory_space<vmem>>, vector<32x1xf32>
    %53 = vector.broadcast %52 : vector<32x1xf32> to vector<32x128xf32>
    %54 = arith.addf %51, %53 : vector<32x128xf32>
    %55 = math.sin %54 : vector<32x128xf32>
    %c0_19 = arith.constant 0 : index
    %c0_20 = arith.constant 0 : index
    %56 = vector.load %arg5[%c0_19, %c0_20] : memref<32x32xf32, #tpu.memory_space<vmem>>, vector<32x32xf32>
    %cst_21 = arith.constant dense<0.000000e+00> : vector<32x128xf32>
    %57 = tpu.matmul %56, %55, %cst_21 {dimension_numbers = #tpu.dot_dimension_numbers<[1], [0], [0], [1], [0, 0, 1, 1], [], []>} : vector<32x32xf32>, vector<32x128xf32>, vector<32x128xf32> -> vector<32x128xf32>
    %c0_22 = arith.constant 0 : index
    %c0_23 = arith.constant 0 : index
    %58 = vector.load %arg6[%c0_22, %c0_23] : memref<32x1xf32, #tpu.memory_space<vmem>>, vector<32x1xf32>
    %59 = vector.broadcast %58 : vector<32x1xf32> to vector<32x128xf32>
    %60 = arith.addf %57, %59 : vector<32x128xf32>
    %61 = math.sin %60 : vector<32x128xf32>
    %c0_24 = arith.constant 0 : index
    %c0_25 = arith.constant 0 : index
    %62 = vector.load %arg7[%c0_24, %c0_25] : memref<8x32xf32, #tpu.memory_space<vmem>>, vector<8x32xf32>
    %cst_26 = arith.constant dense<0.000000e+00> : vector<8x128xf32>
    %63 = tpu.matmul %62, %61, %cst_26 {dimension_numbers = #tpu.dot_dimension_numbers<[1], [0], [0], [1], [0, 0, 1, 1], [], []>} : vector<8x32xf32>, vector<32x128xf32>, vector<8x128xf32> -> vector<8x128xf32>
    %c0_27 = arith.constant 0 : index
    %c0_28 = arith.constant 0 : index
    %64 = vector.load %arg8[%c0_27, %c0_28] : memref<8x1xf32, #tpu.memory_space<vmem>>, vector<8x1xf32>
    %65 = vector.broadcast %64 : vector<8x1xf32> to vector<8x128xf32>
    %66 = arith.addf %63, %65 : vector<8x128xf32>
    %c0_29 = arith.constant 0 : index
    %c0_30 = arith.constant 0 : index
    %67 = vector.load %arg9[%c0_29, %c0_30] : memref<8x128xf32, #tpu.memory_space<vmem>>, vector<8x128xf32>
    tpu.vector_store %arg9[%c0_29, %c0_30], %66 {strides = array<i32>} : memref<8x128xf32, #tpu.memory_space<vmem>>, vector<8x128xf32>,
    return
  }
  func.func @transform_0(%arg0: i32) -> (i32, i32) {
    %c0_i32 = arith.constant 0 : i32
    %c0_i32_0 = arith.constant 0 : i32
    %c0_i32_1 = arith.constant 0 : i32
    return %c0_i32, %c0_i32_0 : i32, i32
  }
  func.func @transform_1(%arg0: i32) -> (i32, i32) {
    %c0_i32 = arith.constant 0 : i32
    %c0_i32_0 = arith.constant 0 : i32
    %c0_i32_1 = arith.constant 0 : i32
    return %c0_i32, %c0_i32_0 : i32, i32
  }
  func.func @transform_2(%arg0: i32) -> (i32, i32) {
    %c0_i32 = arith.constant 0 : i32
    %c0_i32_0 = arith.constant 0 : i32
    %c0_i32_1 = arith.constant 0 : i32
    return %c0_i32, %c0_i32_0 : i32, i32
  }
  func.func @transform_3(%arg0: i32) -> (i32, i32) {
    %c0_i32 = arith.constant 0 : i32
    %c0_i32_0 = arith.constant 0 : i32
    %c0_i32_1 = arith.constant 0 : i32
    return %c0_i32, %c0_i32_0 : i32, i32
  }
  func.func @transform_4(%arg0: i32) -> (i32, i32) {
    %c0_i32 = arith.constant 0 : i32
    %c0_i32_0 = arith.constant 0 : i32
    %c0_i32_1 = arith.constant 0 : i32
    return %c0_i32, %c0_i32_0 : i32, i32
  }
  func.func @transform_5(%arg0: i32) -> (i32, i32) {
    %c0_i32 = arith.constant 0 : i32
    %c0_i32_0 = arith.constant 0 : i32
    %c0_i32_1 = arith.constant 0 : i32
    return %c0_i32, %c0_i32_0 : i32, i32
  }
  func.func @transform_6(%arg0: i32) -> (i32, i32) {
    %c0_i32 = arith.constant 0 : i32
    %c0_i32_0 = arith.constant 0 : i32
    %c0_i32_1 = arith.constant 0 : i32
    return %c0_i32, %c0_i32_0 : i32, i32
  }
  func.func @transform_7(%arg0: i32) -> (i32, i32) {
    %c0_i32 = arith.constant 0 : i32
    %c0_i32_0 = arith.constant 0 : i32
    %c0_i32_1 = arith.constant 0 : i32
    return %c0_i32, %c0_i32_0 : i32, i32
  }
  func.func @transform_8(%arg0: i32) -> (i32, i32) {
    %c0_i32 = arith.constant 0 : i32
    %c0_i32_0 = arith.constant 0 : i32
    return %c0_i32, %arg0 : i32, i32
  }
}

</mosaic_0001>

<llo_original>
// kernel: tpu_custom_call.1
$region0: #{tpu_custom_call.1}
  #allocation0 [shape = 'u32[]', space=smem, size = 0x4, offset = 0x4, fixed_abs, tag = 'smem constant byte address 0x4 - core index']
  #allocation1 [shape = 'u32[144,128]{1,0:T(1,128)}', space=vmem, size = 0x12000, scoped, tag = 'internal scratch']
  %s0 = inlined_call_operand.vmem [shape: f32[32,2], index: 0, kind: input, shape index: {}]
  %s1 = inlined_call_operand.vmem [shape: f32[32,1], index: 1, kind: input, shape index: {}]
  %s2 = inlined_call_operand.vmem [shape: f32[32,32], index: 2, kind: input, shape index: {}]
  %s3 = inlined_call_operand.vmem [shape: f32[32,1], index: 3, kind: input, shape index: {}]
  %s4 = inlined_call_operand.vmem [shape: f32[32,32], index: 4, kind: input, shape index: {}]
  %s5 = inlined_call_operand.vmem [shape: f32[32,1], index: 5, kind: input, shape index: {}]
  %s6 = inlined_call_operand.vmem [shape: f32[8,32], index: 6, kind: input, shape index: {}]
  %s7 = inlined_call_operand.vmem [shape: f32[8,1], index: 7, kind: input, shape index: {}]
  %s8 = inlined_call_operand.hbm [shape: f32[8,256], index: 8, kind: output, shape index: {}]
  %s9 = sld [smem:[#allocation0]]
  $region65: #{tpu_custom_call.1} parent=0
    _
  %s11 = ssub.s32 1, %s9
  %s12 = scalar_select 0, %s11, %s9
  $region1: #{tpu_custom_call.1} parent=0
    #allocation2 [shape = 'u8[8192]{0}', space=vmem, size = 0x2000, scoped, tag = 'output window, operand 0']
    #allocation3 [shape = 's32[2]{0}', space=sflag, size = 0x8, scoped, tag = 'scoped memory for tpu_custom_call.1']
    %13 = vsyncpa [#allocation3], 0
    %s14 = scalar_lea.sflag [#allocation3], 1
    %15 = vsyncpa %s14, 0
    loop: start=0, step=1, limit=4
    $region2: #{tpu_custom_call.1} parent=1 // loop_pre_header
      _
    $region3: #{tpu_custom_call.1} parent=1 // loop_header
      %s17 = sphi 0, %s21
      %p18 = scmp.ge.s32.totalorder %s17, 4
      %s25 = sphi 0, %s25
      %s27 = sphi 0, %s25
      %s28 = sphi 0, %s27
      %s42 = sphi 0, %s28
      %s46 = sphi 0, %s46
      %s48 = sphi 0, %s46
      %s49 = sphi 0, %s48
      %s63 = sphi 0, %s49
      %s67 = sphi 0, %s67
      %s69 = sphi 0, %s67
      %s70 = sphi 0, %s69
      %s84 = sphi 0, %s70
      %s88 = sphi 0, %s88
      %s90 = sphi 0, %s88
      %s91 = sphi 0, %s90
      %s105 = sphi 0, %s91
      %s109 = sphi 0, %s109
      %s111 = sphi 0, %s109
      %s112 = sphi 0, %s111
      %s126 = sphi 0, %s112
      %s130 = sphi 0, %s130
      %s132 = sphi 0, %s130
      %s133 = sphi 0, %s132
      %s147 = sphi 0, %s133
      %s151 = sphi 0, %s151
      %s153 = sphi 0, %s151
      %s154 = sphi 0, %s153
      %s168 = sphi 0, %s154
      %s172 = sphi 0, %s172
      %s174 = sphi 0, %s172
      %s175 = sphi 0, %s174
      %s189 = sphi 0, %s175
      %s195 = sphi 0, %s197
      %s198 = sphi 0, %s195
      %s199 = sphi 0, %s198
      %s215 = sphi 0, %s199
    $region4: #{tpu_custom_call.1} parent=1 // loop_header_branch
      %20 = sbr.rel (%p18) target = $region8
    $region5: #{tpu_custom_call.1} parent=1 // loop_body
      %s22 = ssub.s32 %s17, 1
      %s23 = ssub.s32 %s17, 2
      %s24 = sadd.s32 %s17, 1
      %s26 = sadd.s32 %s25, 1
      %p29 = scmp.eq.s32.totalorder %s17, 1
      %p30 = scmp.ne.s32.totalorder %s25, %s27
      %p31 = scmp.eq.s32.totalorder %s17, 0
      %p32 = por %p30, %p31
      %p33 = scmp.ne.s32.totalorder %s25, %s27
      %p34 = scmp.eq.s32.totalorder %s22, 1
      %p35 = por %p33, %p34
      %p36 = scmp.ne.s32.totalorder %s27, %s28
      %p37 = scmp.eq.s32.totalorder %s22, 0
      %p38 = por %p36, %p37
      %p39 = scmp.ne.s32.totalorder %s27, %s28
      %p40 = scmp.eq.s32.totalorder %s23, 1
      %p41 = por %p39, %p40
      %p43 = scmp.ne.s32.totalorder %s28, %s42
      %p44 = scmp.eq.s32.totalorder %s23, 0
      %p45 = por %p43, %p44
      %s47 = sadd.s32 %s46, 1
      %p50 = scmp.eq.s32.totalorder %s17, 1
      %p51 = scmp.ne.s32.totalorder %s46, %s48
      %p52 = scmp.eq.s32.totalorder %s17, 0
      %p53 = por %p51, %p52
      %p54 = scmp.ne.s32.totalorder %s46, %s48
      %p55 = scmp.eq.s32.totalorder %s22, 1
      %p56 = por %p54, %p55
      %p57 = scmp.ne.s32.totalorder %s48, %s49
      %p58 = scmp.eq.s32.totalorder %s22, 0
      %p59 = por %p57, %p58
      %p60 = scmp.ne.s32.totalorder %s48, %s49
      %p61 = scmp.eq.s32.totalorder %s23, 1
      %p62 = por %p60, %p61
      %p64 = scmp.ne.s32.totalorder %s49, %s63
      %p65 = scmp.eq.s32.totalorder %s23, 0
      %p66 = por %p64, %p65
      %s68 = sadd.s32 %s67, 1
      %p71 = scmp.eq.s32.totalorder %s17, 1
      %p72 = scmp.ne.s32.totalorder %s67, %s69
      %p73 = scmp.eq.s32.totalorder %s17, 0
      %p74 = por %p72, %p73
      %p75 = scmp.ne.s32.totalorder %s67, %s69
      %p76 = scmp.eq.s32.totalorder %s22, 1
      %p77 = por %p75, %p76
      %p78 = scmp.ne.s32.totalorder %s69, %s70
      %p79 = scmp.eq.s32.totalorder %s22, 0
      %p80 = por %p78, %p79
      %p81 = scmp.ne.s32.totalorder %s69, %s70
      %p82 = scmp.eq.s32.totalorder %s23, 1
      %p83 = por %p81, %p82
      %p85 = scmp.ne.s32.totalorder %s70, %s84
      %p86 = scmp.eq.s32.totalorder %s23, 0
      %p87 = por %p85, %p86
      %s89 = sadd.s32 %s88, 1
      %p92 = scmp.eq.s32.totalorder %s17, 1
      %p93 = scmp.ne.s32.totalorder %s88, %s90
      %p94 = scmp.eq.s32.totalorder %s17, 0
      %p95 = por %p93, %p94
      %p96 = scmp.ne.s32.totalorder %s88, %s90
      %p97 = scmp.eq.s32.totalorder %s22, 1
      %p98 = por %p96, %p97
      %p99 = scmp.ne.s32.totalorder %s90, %s91
      %p100 = scmp.eq.s32.totalorder %s22, 0
      %p101 = por %p99, %p100
      %p102 = scmp.ne.s32.totalorder %s90, %s91
      %p103 = scmp.eq.s32.totalorder %s23, 1
      %p104 = por %p102, %p103
      %p106 = scmp.ne.s32.totalorder %s91, %s105
      %p107 = scmp.eq.s32.totalorder %s23, 0
      %p108 = por %p106, %p107
      %s110 = sadd.s32 %s109, 1
      %p113 = scmp.eq.s32.totalorder %s17, 1
      %p114 = scmp.ne.s32.totalorder %s109, %s111
      %p115 = scmp.eq.s32.totalorder %s17, 0
      %p116 = por %p114, %p115
      %p117 = scmp.ne.s32.totalorder %s109, %s111
      %p118 = scmp.eq.s32.totalorder %s22, 1
      %p119 = por %p117, %p118
      %p120 = scmp.ne.s32.totalorder %s111, %s112
      %p121 = scmp.eq.s32.totalorder %s22, 0
      %p122 = por %p120, %p121
      %p123 = scmp.ne.s32.totalorder %s111, %s112
      %p124 = scmp.eq.s32.totalorder %s23, 1
      %p125 = por %p123, %p124
      %p127 = scmp.ne.s32.totalorder %s112, %s126
      %p128 = scmp.eq.s32.totalorder %s23, 0
      %p129 = por %p127, %p128
      %s131 = sadd.s32 %s130, 1
      %p134 = scmp.eq.s32.totalorder %s17, 1
      %p135 = scmp.ne.s32.totalorder %s130, %s132
      %p136 = scmp.eq.s32.totalorder %s17, 0
      %p137 = por %p135, %p136
      %p138 = scmp.ne.s32.totalorder %s130, %s132
      %p139 = scmp.eq.s32.totalorder %s22, 1
      %p140 = por %p138, %p139
      %p141 = scmp.ne.s32.totalorder %s132, %s133
      %p142 = scmp.eq.s32.totalorder %s22, 0
      %p143 = por %p141, %p142
      %p144 = scmp.ne.s32.totalorder %s132, %s133
      %p145 = scmp.eq.s32.totalorder %s23, 1
      %p146 = por %p144, %p145
      %p148 = scmp.ne.s32.totalorder %s133, %s147
      %p149 = scmp.eq.s32.totalorder %s23, 0
      %p150 = por %p148, %p149
      %s152 = sadd.s32 %s151, 1
      %p155 = scmp.eq.s32.totalorder %s17, 1
      %p156 = scmp.ne.s32.totalorder %s151, %s153
      %p157 = scmp.eq.s32.totalorder %s17, 0
      %p158 = por %p156, %p157
      %p159 = scmp.ne.s32.totalorder %s151, %s153
      %p160 = scmp.eq.s32.totalorder %s22, 1
      %p161 = por %p159, %p160
      %p162 = scmp.ne.s32.totalorder %s153, %s154
      %p163 = scmp.eq.s32.totalorder %s22, 0
      %p164 = por %p162, %p163
      %p165 = scmp.ne.s32.totalorder %s153, %s154
      %p166 = scmp.eq.s32.totalorder %s23, 1
      %p167 = por %p165, %p166
      %p169 = scmp.ne.s32.totalorder %s154, %s168
      %p170 = scmp.eq.s32.totalorder %s23, 0
      %p171 = por %p169, %p170
      %s173 = sadd.s32 %s172, 1
      %p176 = scmp.eq.s32.totalorder %s17, 1
      %p177 = scmp.ne.s32.totalorder %s172, %s174
      %p178 = scmp.eq.s32.totalorder %s17, 0
      %p179 = por %p177, %p178
      %p180 = scmp.ne.s32.totalorder %s172, %s174
      %p181 = scmp.eq.s32.totalorder %s22, 1
      %p182 = por %p180, %p181
      %p183 = scmp.ne.s32.totalorder %s174, %s175
      %p184 = scmp.eq.s32.totalorder %s22, 0
      %p185 = por %p183, %p184
      %p186 = scmp.ne.s32.totalorder %s174, %s175
      %p187 = scmp.eq.s32.totalorder %s23, 1
      %p188 = por %p186, %p187
      %p190 = scmp.ne.s32.totalorder %s175, %s189
      %p191 = scmp.eq.s32.totalorder %s23, 0
      %p192 = por %p190, %p191
      %s193 = ssub.s32 %s17, %s24
      %p194 = scmp.eq.s32.totalorder %s193, 0
      %s196 = sadd.s32 %s195, 1
      %s197 = scalar_select %p194, %s195, %s196
      %p200 = pneg %p194
      %p201 = scmp.eq.s32.totalorder %s17, 1
      %p202 = por %p200, %p201
      %p203 = scmp.ne.s32.totalorder %s195, %s198
      %p204 = scmp.eq.s32.totalorder %s17, 0
      %p205 = por %p203, %p204
      %p206 = scmp.ne.s32.totalorder %s195, %s198
      %p207 = scmp.eq.s32.totalorder %s22, 1
      %p208 = por %p206, %p207
      %p209 = scmp.ne.s32.totalorder %s198, %s199
      %p210 = scmp.eq.s32.totalorder %s22, 0
      %p211 = por %p209, %p210
      %p212 = scmp.ne.s32.totalorder %s198, %s199
      %p213 = scmp.eq.s32.totalorder %s23, 1
      %p214 = por %p212, %p213
      %p216 = scmp.ne.s32.totalorder %s199, %s215
      %p217 = scmp.eq.s32.totalorder %s23, 0
      %p218 = por %p216, %p217
      %p219 = scmp.le.s32.totalorder 1, %s17
      %p220 = scmp.lt.s32.totalorder %s17, 3
      %p221 = pnand %p219, %p220
      %p222 = pneg %p221
      // Predicated region
      $region9: #{tpu_custom_call.1} parent=5 // pred_check
        _
      $region10: #{tpu_custom_call.1} parent=5 // pred_check_branch
        %224 = sbr.rel (%p221) target = $region12
      $region11: #{tpu_custom_call.1} parent=5 // pred_region
        %s225 = ssub.s32 %s17, 1
        // Predicated region
        $region13: #{tpu_custom_call.1} parent=11 // pred_check
          %p226 = pneg %p38
        $region14: #{tpu_custom_call.1} parent=11 // pred_check_branch
          %228 = sbr.rel (%p226) target = $region16
        $region15: #{tpu_custom_call.1} parent=11 // pred_region
          _
        $region16: #{tpu_custom_call.1} parent=11 // pred_fallthru
          _
        // Predicated region
        $region17: #{tpu_custom_call.1} parent=11 // pred_check
          %p229 = pneg %p59
        $region18: #{tpu_custom_call.1} parent=11 // pred_check_branch
          %231 = sbr.rel (%p229) target = $region20
        $region19: #{tpu_custom_call.1} parent=11 // pred_region
          _
        $region20: #{tpu_custom_call.1} parent=11 // pred_fallthru
          _
        // Predicated region
        $region21: #{tpu_custom_call.1} parent=11 // pred_check
          %p232 = pneg %p80
        $region22: #{tpu_custom_call.1} parent=11 // pred_check_branch
          %234 = sbr.rel (%p232) target = $region24
        $region23: #{tpu_custom_call.1} parent=11 // pred_region
          _
        $region24: #{tpu_custom_call.1} parent=11 // pred_fallthru
          _
        // Predicated region
        $region25: #{tpu_custom_call.1} parent=11 // pred_check
          %p235 = pneg %p101
        $region26: #{tpu_custom_call.1} parent=11 // pred_check_branch
          %237 = sbr.rel (%p235) target = $region28
        $region27: #{tpu_custom_call.1} parent=11 // pred_region
          _
        $region28: #{tpu_custom_call.1} parent=11 // pred_fallthru
          _
        // Predicated region
        $region29: #{tpu_custom_call.1} parent=11 // pred_check
          %p238 = pneg %p122
        $region30: #{tpu_custom_call.1} parent=11 // pred_check_branch
          %240 = sbr.rel (%p238) target = $region32
        $region31: #{tpu_custom_call.1} parent=11 // pred_region
          _
        $region32: #{tpu_custom_call.1} parent=11 // pred_fallthru
          _
        // Predicated region
        $region33: #{tpu_custom_call.1} parent=11 // pred_check
          %p241 = pneg %p143
        $region34: #{tpu_custom_call.1} parent=11 // pred_check_branch
          %243 = sbr.rel (%p241) target = $region36
        $region35: #{tpu_custom_call.1} parent=11 // pred_region
          _
        $region36: #{tpu_custom_call.1} parent=11 // pred_fallthru
          _
        // Predicated region
        $region37: #{tpu_custom_call.1} parent=11 // pred_check
          %p244 = pneg %p164
        $region38: #{tpu_custom_call.1} parent=11 // pred_check_branch
          %246 = sbr.rel (%p244) target = $region40
        $region39: #{tpu_custom_call.1} parent=11 // pred_region
          _
        $region40: #{tpu_custom_call.1} parent=11 // pred_fallthru
          _
        // Predicated region
        $region41: #{tpu_custom_call.1} parent=11 // pred_check
          %p247 = pneg %p185
        $region42: #{tpu_custom_call.1} parent=11 // pred_check_branch
          %249 = sbr.rel (%p247) target = $region44
        $region43: #{tpu_custom_call.1} parent=11 // pred_region
          _
        $region44: #{tpu_custom_call.1} parent=11 // pred_fallthru
          _
      $region12: #{tpu_custom_call.1} parent=5 // pred_fallthru
        _
      %p250 = scmp.lt.s32.totalorder %s17, 2
      // Predicated region
      $region45: #{tpu_custom_call.1} parent=5 // pred_check
        %p251 = pneg %p250
      $region46: #{tpu_custom_call.1} parent=5 // pred_check_branch
        %253 = sbr.rel (%p251) target = $region48
      $region47: #{tpu_custom_call.1} parent=5 // pred_region
        _
      $region48: #{tpu_custom_call.1} parent=5 // pred_fallthru
        _
      %p254 = scmp.le.s32.totalorder 1, %s17
      %p255 = scmp.lt.s32.totalorder %s17, 3
      %p256 = pnand %p254, %p255
      %p257 = pneg %p256
      // Predicated region
      $region49: #{tpu_custom_call.1} parent=5 // pred_check
        _
      $region50: #{tpu_custom_call.1} parent=5 // pred_check_branch
        %259 = sbr.rel (%p256) target = $region52
      $region51: #{tpu_custom_call.1} parent=5 // pred_region
        %s260 = ssub.s32 %s17, 1
        %p261 = pneg %p38
        %p262 = pneg %p35
        %p263 = pneg %p59
        %p264 = pneg %p56
        %p265 = pneg %p80
        %p266 = pneg %p77
        %p267 = pneg %p101
        %p268 = pneg %p98
        %p269 = pneg %p122
        %p270 = pneg %p119
        %p271 = pneg %p143
        %p272 = pneg %p140
        %p273 = pneg %p164
        %p274 = pneg %p161
        %p275 = pneg %p185
        %p276 = pneg %p182
        %p277 = pneg %p211
        %p278 = pneg %p208
        %s279 = sand.u32 %s198, 1
        %s280 = scalar_lea.sflag [#allocation3], %s279
        %s281 = sand.u32 %s198, 1
        %s282 = smul.addr %s281, 8
        %s283 = scalar_lea.vmem [#allocation2], %s282
        %s284 = smul.u32 %s22, 128
        %s285 = scvt.s32.f32 %s284
        %v286 = vlaneseq
        %v287 = vand.u32 %v286, 127
        %v288 = vcvt.s32.f32 %v287
        %v289 = vstv %s285
        %v290 = vadd.f32 %v289, %v288
        %v291 = vmul.f32 %v290, 0.0625
        %v292 = vfloor.f32 %v291
        %v293 = vmul.f32 %v292, 16.0
        %v294 = vsub.f32 %v290, %v293
        %vm295 = vcmp.ge.f32.partialorder %v294, 16.0
        %v296 = vadd.f32 %v292, 1.0
        %v297 = vsel %vm295, %v296, %v292
        %v298 = vsub.f32 %v294, 16.0
        %v299 = vsel %vm295, %v298, %v294
        %vm300 = vcmp.lt.f32.partialorder %v299, 0.0
        %v301 = vsub.f32 %v297, 1.0
        %v302 = vsel %vm300, %v301, %v297
        %v303 = vadd.f32 %v299, 16.0
        %v304 = vsel %vm300, %v303, %v299
        %v305 = vmul.f32 %v302, 0.13333334
        %v306 = vadd.f32 %v305, -1.0
        %v307 = vmul.f32 %v304, 0.13333334
        %v308 = vadd.f32 %v307, -1.0
        %v309 = vld [vmem:[%s0] sm:$0xff]
        %v310 = vld [vmem:[%s0 + $0x8] sm:$0xff]
        %v311 = vld [vmem:[%s0 + $0x10] sm:$0xff]
        %v312 = vld [vmem:[%s0 + $0x18] sm:$0xff]
        %314 = vset.pattern.permute.xlu0 0
        %315 = vperm.xlu0 %314, %v309
        %v316 = vpop.permute.xlu0 %315
        %319 = vset.pattern.permute.xlu0 0
        %320 = vperm.xlu0 %319, %v310
        %v321 = vpop.permute.xlu0 %320
        %324 = vset.pattern.permute.xlu0 0
        %325 = vperm.xlu0 %324, %v311
        %v326 = vpop.permute.xlu0 %325
        %329 = vset.pattern.permute.xlu0 0
        %330 = vperm.xlu0 %329, %v312
        %v331 = vpop.permute.xlu0 %330
        %v333 = vmul.f32 %v316, %v306
        %v334 = vmul.f32 %v321, %v306
        %v335 = vmul.f32 %v326, %v306
        %v336 = vmul.f32 %v331, %v306
        %337 = vset.pattern.permute.xlu0 1
        %338 = vperm.xlu0 %337, %v309
        %v339 = vpop.permute.xlu0 %338
        %341 = vset.pattern.permute.xlu0 1
        %342 = vperm.xlu0 %341, %v310
        %v343 = vpop.permute.xlu0 %342
        %345 = vset.pattern.permute.xlu0 1
        %346 = vperm.xlu0 %345, %v311
        %v347 = vpop.permute.xlu0 %346
        %349 = vset.pattern.permute.xlu0 1
        %350 = vperm.xlu0 %349, %v312
        %v351 = vpop.permute.xlu0 %350
        %v353 = vmul.f32 %v339, %v308
        %v354 = vmul.f32 %v343, %v308
        %v355 = vmul.f32 %v347, %v308
        %v356 = vmul.f32 %v351, %v308
        %v357 = vadd.f32 %v333, %v353
        %v358 = vadd.f32 %v334, %v354
        %v359 = vadd.f32 %v335, %v355
        %v360 = vadd.f32 %v336, %v356
        %v361 = vld [vmem:[%s1] sm:$0xff]
        %v362 = vld [vmem:[%s1 + $0x8] sm:$0xff]
        %v363 = vld [vmem:[%s1 + $0x10] sm:$0xff]
        %v364 = vld [vmem:[%s1 + $0x18] sm:$0xff]
        %366 = vset.pattern.permute.xlu0 0
        %367 = vperm.xlu0 %366, %v361
        %v368 = vpop.permute.xlu0 %367
        %371 = vset.pattern.permute.xlu0 0
        %372 = vperm.xlu0 %371, %v362
        %v373 = vpop.permute.xlu0 %372
        %376 = vset.pattern.permute.xlu0 0
        %377 = vperm.xlu0 %376, %v363
        %v378 = vpop.permute.xlu0 %377
        %381 = vset.pattern.permute.xlu0 0
        %382 = vperm.xlu0 %381, %v364
        %v383 = vpop.permute.xlu0 %382
        %v385 = vadd.f32 %v357, %v368
        %v386 = vadd.f32 %v358, %v373
        %v387 = vadd.f32 %v359, %v378
        %v388 = vadd.f32 %v360, %v383
        %v389 = vand.u32 2147483647, %v385
        %vm390 = vcmp.le.f32.partialorder %v389, 0.7853982
        %vm391 = vcmp.lt.s32.totalorder %v385, 0
        %v392 = vand.u32 %v385, 2139095040
        %v393 = vshrl.u32 %v392, 23
        %v394 = vsub.s32 %v393, 127
        %v395 = vand.u32 2147483647, %v385
        %v396 = vand.u32 %v395, 8388607
        %v397 = vor.u32 %v396, 8388608
        %v398 = vsub.s32 0, %v397
        %v399 = vadd.s32 %v394, 1
        %vm400 = vcmp.gt.s32.totalorder %v399, 0
        %v401 = vsel %vm400, %v399, 0
        %v402 = vshrl.u32 %v401, 5
        %v403 = vand.u32 %v401, 31
        %v404 = vsub.s32 32, %v403
        %v405 = vshrl.u32 683565275, %v404
        %v406 = vshll.u32 683565275, %v403
        %v407 = vshrl.u32 2475754826, %v404
        %v408 = vor.u32 %v406, %v407
        %v409 = vshll.u32 2475754826, %v403
        %v410 = vshrl.u32 2131351028, %v404
        %v411 = vor.u32 %v409, %v410
        %v412 = vshll.u32 2131351028, %v403
        %v413 = vshrl.u32 2102212464, %v404
        %v414 = vor.u32 %v412, %v413
        %v415 = vshll.u32 2102212464, %v403
        %v416 = vshrl.u32 920167782, %v404
        %v417 = vor.u32 %v415, %v416
        %v418 = vshll.u32 920167782, %v403
        %v419 = vshrl.u32 1326507024, %v404
        %v420 = vor.u32 %v418, %v419
        %vm421 = vcmp.lt.s32.totalorder %v402, 1
        %vm422 = vcmp.lt.s32.totalorder %v402, 2
        %vm423 = vcmp.lt.s32.totalorder %v402, 3
        %vm424 = vcmp.lt.s32.totalorder %v402, 4
        %v425 = vsel %vm421, %v405, %v408
        %v426 = vsel %vm424, %v414, 2102212464
        %v427 = vsel %vm423, %v411, %v426
        %v428 = vsel %vm422, %v425, %v427
        %v429 = vsel %vm421, %v408, %v411
        %v430 = vsel %vm424, %v417, 920167782
        %v431 = vsel %vm423, %v414, %v430
        %v432 = vsel %vm422, %v429, %v431
        %v433 = vsel %vm421, %v411, %v414
        %v434 = vsel %vm424, %v420, 1326507024
        %v435 = vsel %vm423, %v417, %v434
        %v436 = vsel %vm422, %v433, %v435
        %v437 = vshll.u32 %v397, 8
        %v438 = vmul.u32.u64.compose %v437, %v436
        %v439 = vextract.low.u32 %v438
        %v440 = vextract.high.u32 %v438
        %v441 = vmul.u32.u64.compose %v437, %v432
        %v442 = vextract.low.u32 %v441
        %v443 = vextract.high.u32 %v441
        %v444 = vmul.u32 %v437, %v428
        %v445 = vadd.s32 %v440, %v442
        %vm446 = vc.u32 %v440, %v442
        %v447 = vadd.s32 %v443, 1
        %v448 = vsel %vm446, %v447, %v443
        %v449 = vadd.s32 %v444, %v448
        %v450 = vadd.s32 %v449, 536870912
        %v451 = vshrl.u32 %v450, 30
        %v452 = vshll.u32 %v451, 30
        %v453 = vsub.s32 %v449, %v452
        %vm454 = vcmp.lt.s32.totalorder %v453, 0
        %v455 = vsub.s32 0, %v453
        %v456 = vsel %vm454, %v455, %v453
        %v457 = vclz %v456
        %v458 = vsub.s32 %v457, 2
        %vm459 = vcmp.gt.s32.totalorder 0, %v458
        %v460 = vsel %vm459, 0, %v458
        %v461 = vsub.s32 32, %v460
        %v462 = vshll.u32 %v453, %v460
        %v463 = vshrl.u32 %v445, %v461
        %v464 = vor.u32 %v462, %v463
        %v465 = vsub.s32 4294967266, %v460
        %v466 = vadd.s32 %v465, 127
        %v467 = vshll.u32 %v466, 23
        %v468 = vor.u32 4788187, %v467
        %v469 = vand.u32 2147483647, %v468
        %v471 = vcvt.s32.f32 %v464
        %v472 = vmul.f32 %v471, %v469
        %v473 = vxor.u32 %v472, 2147483648
        %v474 = vsel %vm391, %v473, %v472
        %v475 = vsub.s32 4, %v451
        %v476 = vsel %vm391, %v475, %v451
        %v477 = vsel %vm390, %v385, %v474
        %v478 = vsel %vm390, 0, %v476
        %v479 = vcosq.f32.pop %v477
        %v480 = vsinq.f32.pop %v477
        %vm481 = vweird.f32 %v385
        %v482 = vadd.s32 %v478, 3
        %v483 = vand.u32 %v482, 3
        %vm484 = vcmp.lt.s32.totalorder %v483, 2
        %vm485 = vcmp.eq.s32.totalorder %v483, 0
        %v486 = vxor.u32 %v480, 2147483648
        %v487 = vsel %vm485, %v479, %v486
        %vm488 = vcmp.eq.s32.totalorder %v483, 2
        %v489 = vxor.u32 %v479, 2147483648
        %v490 = vsel %vm488, %v489, %v480
        %v491 = vsel %vm484, %v487, %v490
        %v492 = vsel %vm481, nan, %v491
        %v493 = vand.u32 2147483647, %v386
        %vm494 = vcmp.le.f32.partialorder %v493, 0.7853982
        %vm495 = vcmp.lt.s32.totalorder %v386, 0
        %v496 = vand.u32 %v386, 2139095040
        %v497 = vshrl.u32 %v496, 23
        %v498 = vsub.s32 %v497, 127
        %v499 = vand.u32 2147483647, %v386
        %v500 = vand.u32 %v499, 8388607
        %v501 = vor.u32 %v500, 8388608
        %v502 = vsub.s32 0, %v501
        %v503 = vadd.s32 %v498, 1
        %vm504 = vcmp.gt.s32.totalorder %v503, 0
        %v505 = vsel %vm504, %v503, 0
        %v506 = vshrl.u32 %v505, 5
        %v507 = vand.u32 %v505, 31
        %v508 = vsub.s32 32, %v507
        %v509 = vshrl.u32 683565275, %v508
        %v510 = vshll.u32 683565275, %v507
        %v511 = vshrl.u32 2475754826, %v508
        %v512 = vor.u32 %v510, %v511
        %v513 = vshll.u32 2475754826, %v507
        %v514 = vshrl.u32 2131351028, %v508
        %v515 = vor.u32 %v513, %v514
        %v516 = vshll.u32 2131351028, %v507
        %v517 = vshrl.u32 2102212464, %v508
        %v518 = vor.u32 %v516, %v517
        %v519 = vshll.u32 2102212464, %v507
        %v520 = vshrl.u32 920167782, %v508
        %v521 = vor.u32 %v519, %v520
        %v522 = vshll.u32 920167782, %v507
        %v523 = vshrl.u32 1326507024, %v508
        %v524 = vor.u32 %v522, %v523
        %vm525 = vcmp.lt.s32.totalorder %v506, 1
        %vm526 = vcmp.lt.s32.totalorder %v506, 2
        %vm527 = vcmp.lt.s32.totalorder %v506, 3
        %vm528 = vcmp.lt.s32.totalorder %v506, 4
        %v529 = vsel %vm525, %v509, %v512
        %v530 = vsel %vm528, %v518, 2102212464
        %v531 = vsel %vm527, %v515, %v530
        %v532 = vsel %vm526, %v529, %v531
        %v533 = vsel %vm525, %v512, %v515
        %v534 = vsel %vm528, %v521, 920167782
        %v535 = vsel %vm527, %v518, %v534
        %v536 = vsel %vm526, %v533, %v535
        %v537 = vsel %vm525, %v515, %v518
        %v538 = vsel %vm528, %v524, 1326507024
        %v539 = vsel %vm527, %v521, %v538
        %v540 = vsel %vm526, %v537, %v539
        %v541 = vshll.u32 %v501, 8
        %v542 = vmul.u32.u64.compose %v541, %v540
        %v543 = vextract.low.u32 %v542
        %v544 = vextract.high.u32 %v542
        %v545 = vmul.u32.u64.compose %v541, %v536
        %v546 = vextract.low.u32 %v545
        %v547 = vextract.high.u32 %v545
        %v548 = vmul.u32 %v541, %v532
        %v549 = vadd.s32 %v544, %v546
        %vm550 = vc.u32 %v544, %v546
        %v551 = vadd.s32 %v547, 1
        %v552 = vsel %vm550, %v551, %v547
        %v553 = vadd.s32 %v548, %v552
        %v554 = vadd.s32 %v553, 536870912
        %v555 = vshrl.u32 %v554, 30
        %v556 = vshll.u32 %v555, 30
        %v557 = vsub.s32 %v553, %v556
        %vm558 = vcmp.lt.s32.totalorder %v557, 0
        %v559 = vsub.s32 0, %v557
        %v560 = vsel %vm558, %v559, %v557
        %v561 = vclz %v560
        %v562 = vsub.s32 %v561, 2
        %vm563 = vcmp.gt.s32.totalorder 0, %v562
        %v564 = vsel %vm563, 0, %v562
        %v565 = vsub.s32 32, %v564
        %v566 = vshll.u32 %v557, %v564
        %v567 = vshrl.u32 %v549, %v565
        %v568 = vor.u32 %v566, %v567
        %v569 = vsub.s32 4294967266, %v564
        %v570 = vadd.s32 %v569, 127
        %v571 = vshll.u32 %v570, 23
        %v572 = vor.u32 4788187, %v571
        %v573 = vand.u32 2147483647, %v572
        %v575 = vcvt.s32.f32 %v568
        %v576 = vmul.f32 %v575, %v573
        %v577 = vxor.u32 %v576, 2147483648
        %v578 = vsel %vm495, %v577, %v576
        %v579 = vsub.s32 4, %v555
        %v580 = vsel %vm495, %v579, %v555
        %v581 = vsel %vm494, %v386, %v578
        %v582 = vsel %vm494, 0, %v580
        %v583 = vcosq.f32.pop %v581
        %v584 = vsinq.f32.pop %v581
        %vm585 = vweird.f32 %v386
        %v586 = vadd.s32 %v582, 3
        %v587 = vand.u32 %v586, 3
        %vm588 = vcmp.lt.s32.totalorder %v587, 2
        %vm589 = vcmp.eq.s32.totalorder %v587, 0
        %v590 = vxor.u32 %v584, 2147483648
        %v591 = vsel %vm589, %v583, %v590
        %vm592 = vcmp.eq.s32.totalorder %v587, 2
        %v593 = vxor.u32 %v583, 2147483648
        %v594 = vsel %vm592, %v593, %v584
        %v595 = vsel %vm588, %v591, %v594
        %v596 = vsel %vm585, nan, %v595
        %v597 = vand.u32 2147483647, %v387
        %vm598 = vcmp.le.f32.partialorder %v597, 0.7853982
        %vm599 = vcmp.lt.s32.totalorder %v387, 0
        %v600 = vand.u32 %v387, 2139095040
        %v601 = vshrl.u32 %v600, 23
        %v602 = vsub.s32 %v601, 127
        %v603 = vand.u32 2147483647, %v387
        %v604 = vand.u32 %v603, 8388607
        %v605 = vor.u32 %v604, 8388608
        %v606 = vsub.s32 0, %v605
        %v607 = vadd.s32 %v602, 1
        %vm608 = vcmp.gt.s32.totalorder %v607, 0
        %v609 = vsel %vm608, %v607, 0
        %v610 = vshrl.u32 %v609, 5
        %v611 = vand.u32 %v609, 31
        %v612 = vsub.s32 32, %v611
        %v613 = vshrl.u32 683565275, %v612
        %v614 = vshll.u32 683565275, %v611
        %v615 = vshrl.u32 2475754826, %v612
        %v616 = vor.u32 %v614, %v615
        %v617 = vshll.u32 2475754826, %v611
        %v618 = vshrl.u32 2131351028, %v612
        %v619 = vor.u32 %v617, %v618
        %v620 = vshll.u32 2131351028, %v611
        %v621 = vshrl.u32 2102212464, %v612
        %v622 = vor.u32 %v620, %v621
        %v623 = vshll.u32 2102212464, %v611
        %v624 = vshrl.u32 920167782, %v612
        %v625 = vor.u32 %v623, %v624
        %v626 = vshll.u32 920167782, %v611
        %v627 = vshrl.u32 1326507024, %v612
        %v628 = vor.u32 %v626, %v627
        %vm629 = vcmp.lt.s32.totalorder %v610, 1
        %vm630 = vcmp.lt.s32.totalorder %v610, 2
        %vm631 = vcmp.lt.s32.totalorder %v610, 3
        %vm632 = vcmp.lt.s32.totalorder %v610, 4
        %v633 = vsel %vm629, %v613, %v616
        %v634 = vsel %vm632, %v622, 2102212464
        %v635 = vsel %vm631, %v619, %v634
        %v636 = vsel %vm630, %v633, %v635
        %v637 = vsel %vm629, %v616, %v619
        %v638 = vsel %vm632, %v625, 920167782
        %v639 = vsel %vm631, %v622, %v638
        %v640 = vsel %vm630, %v637, %v639
        %v641 = vsel %vm629, %v619, %v622
        %v642 = vsel %vm632, %v628, 1326507024
        %v643 = vsel %vm631, %v625, %v642
        %v644 = vsel %vm630, %v641, %v643
        %v645 = vshll.u32 %v605, 8
        %v646 = vmul.u32.u64.compose %v645, %v644
        %v647 = vextract.low.u32 %v646
        %v648 = vextract.high.u32 %v646
        %v649 = vmul.u32.u64.compose %v645, %v640
        %v650 = vextract.low.u32 %v649
        %v651 = vextract.high.u32 %v649
        %v652 = vmul.u32 %v645, %v636
        %v653 = vadd.s32 %v648, %v650
        %vm654 = vc.u32 %v648, %v650
        %v655 = vadd.s32 %v651, 1
        %v656 = vsel %vm654, %v655, %v651
        %v657 = vadd.s32 %v652, %v656
        %v658 = vadd.s32 %v657, 536870912
        %v659 = vshrl.u32 %v658, 30
        %v660 = vshll.u32 %v659, 30
        %v661 = vsub.s32 %v657, %v660
        %vm662 = vcmp.lt.s32.totalorder %v661, 0
        %v663 = vsub.s32 0, %v661
        %v664 = vsel %vm662, %v663, %v661
        %v665 = vclz %v664
        %v666 = vsub.s32 %v665, 2
        %vm667 = vcmp.gt.s32.totalorder 0, %v666
        %v668 = vsel %vm667, 0, %v666
        %v669 = vsub.s32 32, %v668
        %v670 = vshll.u32 %v661, %v668
        %v671 = vshrl.u32 %v653, %v669
        %v672 = vor.u32 %v670, %v671
        %v673 = vsub.s32 4294967266, %v668
        %v674 = vadd.s32 %v673, 127
        %v675 = vshll.u32 %v674, 23
        %v676 = vor.u32 4788187, %v675
        %v677 = vand.u32 2147483647, %v676
        %v679 = vcvt.s32.f32 %v672
        %v680 = vmul.f32 %v679, %v677
        %v681 = vxor.u32 %v680, 2147483648
        %v682 = vsel %vm599, %v681, %v680
        %v683 = vsub.s32 4, %v659
        %v684 = vsel %vm599, %v683, %v659
        %v685 = vsel %vm598, %v387, %v682
        %v686 = vsel %vm598, 0, %v684
        %v687 = vcosq.f32.pop %v685
        %v688 = vsinq.f32.pop %v685
        %vm689 = vweird.f32 %v387
        %v690 = vadd.s32 %v686, 3
        %v691 = vand.u32 %v690, 3
        %vm692 = vcmp.lt.s32.totalorder %v691, 2
        %vm693 = vcmp.eq.s32.totalorder %v691, 0
        %v694 = vxor.u32 %v688, 2147483648
        %v695 = vsel %vm693, %v687, %v694
        %vm696 = vcmp.eq.s32.totalorder %v691, 2
        %v697 = vxor.u32 %v687, 2147483648
        %v698 = vsel %vm696, %v697, %v688
        %v699 = vsel %vm692, %v695, %v698
        %v700 = vsel %vm689, nan, %v699
        %v701 = vand.u32 2147483647, %v388
        %vm702 = vcmp.le.f32.partialorder %v701, 0.7853982
        %vm703 = vcmp.lt.s32.totalorder %v388, 0
        %v704 = vand.u32 %v388, 2139095040
        %v705 = vshrl.u32 %v704, 23
        %v706 = vsub.s32 %v705, 127
        %v707 = vand.u32 2147483647, %v388
        %v708 = vand.u32 %v707, 8388607
        %v709 = vor.u32 %v708, 8388608
        %v710 = vsub.s32 0, %v709
        %v711 = vadd.s32 %v706, 1
        %vm712 = vcmp.gt.s32.totalorder %v711, 0
        %v713 = vsel %vm712, %v711, 0
        %v714 = vshrl.u32 %v713, 5
        %v715 = vand.u32 %v713, 31
        %v716 = vsub.s32 32, %v715
        %v717 = vshrl.u32 683565275, %v716
        %v718 = vshll.u32 683565275, %v715
        %v719 = vshrl.u32 2475754826, %v716
        %v720 = vor.u32 %v718, %v719
        %v721 = vshll.u32 2475754826, %v715
        %v722 = vshrl.u32 2131351028, %v716
        %v723 = vor.u32 %v721, %v722
        %v724 = vshll.u32 2131351028, %v715
        %v725 = vshrl.u32 2102212464, %v716
        %v726 = vor.u32 %v724, %v725
        %v727 = vshll.u32 2102212464, %v715
        %v728 = vshrl.u32 920167782, %v716
        %v729 = vor.u32 %v727, %v728
        %v730 = vshll.u32 920167782, %v715
        %v731 = vshrl.u32 1326507024, %v716
        %v732 = vor.u32 %v730, %v731
        %vm733 = vcmp.lt.s32.totalorder %v714, 1
        %vm734 = vcmp.lt.s32.totalorder %v714, 2
        %vm735 = vcmp.lt.s32.totalorder %v714, 3
        %vm736 = vcmp.lt.s32.totalorder %v714, 4
        %v737 = vsel %vm733, %v717, %v720
        %v738 = vsel %vm736, %v726, 2102212464
        %v739 = vsel %vm735, %v723, %v738
        %v740 = vsel %vm734, %v737, %v739
        %v741 = vsel %vm733, %v720, %v723
        %v742 = vsel %vm736, %v729, 920167782
        %v743 = vsel %vm735, %v726, %v742
        %v744 = vsel %vm734, %v741, %v743
        %v745 = vsel %vm733, %v723, %v726
        %v746 = vsel %vm736, %v732, 1326507024
        %v747 = vsel %vm735, %v729, %v746
        %v748 = vsel %vm734, %v745, %v747
        %v749 = vshll.u32 %v709, 8
        %v750 = vmul.u32.u64.compose %v749, %v748
        %v751 = vextract.low.u32 %v750
        %v752 = vextract.high.u32 %v750
        %v753 = vmul.u32.u64.compose %v749, %v744
        %v754 = vextract.low.u32 %v753
        %v755 = vextract.high.u32 %v753
        %v756 = vmul.u32 %v749, %v740
        %v757 = vadd.s32 %v752, %v754
        %vm758 = vc.u32 %v752, %v754
        %v759 = vadd.s32 %v755, 1
        %v760 = vsel %vm758, %v759, %v755
        %v761 = vadd.s32 %v756, %v760
        %v762 = vadd.s32 %v761, 536870912
        %v763 = vshrl.u32 %v762, 30
        %v764 = vshll.u32 %v763, 30
        %v765 = vsub.s32 %v761, %v764
        %vm766 = vcmp.lt.s32.totalorder %v765, 0
        %v767 = vsub.s32 0, %v765
        %v768 = vsel %vm766, %v767, %v765
        %v769 = vclz %v768
        %v770 = vsub.s32 %v769, 2
        %vm771 = vcmp.gt.s32.totalorder 0, %v770
        %v772 = vsel %vm771, 0, %v770
        %v773 = vsub.s32 32, %v772
        %v774 = vshll.u32 %v765, %v772
        %v775 = vshrl.u32 %v757, %v773
        %v776 = vor.u32 %v774, %v775
        %v777 = vsub.s32 4294967266, %v772
        %v778 = vadd.s32 %v777, 127
        %v779 = vshll.u32 %v778, 23
        %v780 = vor.u32 4788187, %v779
        %v781 = vand.u32 2147483647, %v780
        %v783 = vcvt.s32.f32 %v776
        %v784 = vmul.f32 %v783, %v781
        %v785 = vxor.u32 %v784, 2147483648
        %v786 = vsel %vm703, %v785, %v784
        %v787 = vsub.s32 4, %v763
        %v788 = vsel %vm703, %v787, %v763
        %v789 = vsel %vm702, %v388, %v786
        %v790 = vsel %vm702, 0, %v788
        %v791 = vcosq.f32.pop %v789
        %v792 = vsinq.f32.pop %v789
        %vm793 = vweird.f32 %v388
        %v794 = vadd.s32 %v790, 3
        %v795 = vand.u32 %v794, 3
        %vm796 = vcmp.lt.s32.totalorder %v795, 2
        %vm797 = vcmp.eq.s32.totalorder %v795, 0
        %v798 = vxor.u32 %v792, 2147483648
        %v799 = vsel %vm797, %v791, %v798
        %vm800 = vcmp.eq.s32.totalorder %v795, 2
        %v801 = vxor.u32 %v791, 2147483648
        %v802 = vsel %vm800, %v801, %v792
        %v803 = vsel %vm796, %v799, %v802
        %v804 = vsel %vm793, nan, %v803
        %v805 = vld [vmem:[%s2] sm:$0xff]
        %v806 = vld [vmem:[%s2 + $0x8] sm:$0xff]
        %v807 = vld [vmem:[%s2 + $0x10] sm:$0xff]
        %v808 = vld [vmem:[%s2 + $0x18] sm:$0xff]
        %v809 = vld [vmem:[%s3] sm:$0xff]
        %v810 = vld [vmem:[%s3 + $0x8] sm:$0xff]
        %v811 = vld [vmem:[%s3 + $0x10] sm:$0xff]
        %v812 = vld [vmem:[%s3 + $0x18] sm:$0xff]
        %814 = vset.pattern.permute.xlu0 0
        %815 = vperm.xlu0 %814, %v809
        %v816 = vpop.permute.xlu0 %815
        %819 = vset.pattern.permute.xlu0 0
        %820 = vperm.xlu0 %819, %v810
        %v821 = vpop.permute.xlu0 %820
        %824 = vset.pattern.permute.xlu0 0
        %825 = vperm.xlu0 %824, %v811
        %v826 = vpop.permute.xlu0 %825
        %829 = vset.pattern.permute.xlu0 0
        %830 = vperm.xlu0 %829, %v812
        %v831 = vpop.permute.xlu0 %830
        %vm833 = vcmask 261120
        %v835 = vsel %vm833, %v805, 0
        %v838 = vsel %vm833, %v806, 0
        %v841 = vsel %vm833, %v807, 0
        %v844 = vsel %vm833, %v808, 0
        %846 = vmatprep.subr.mxu0 0.0
        %847 = vmatpush1.msra.mxu0 0.0
        %848 = vmatprep.subr.mxu0 0.0
        %849 = vmatpush1.msra.mxu0 0.0
        %850 = vmatprep.subr.mxu0 0.0
        %851 = vmatpush1.msra.mxu0 0.0
        %852 = vmatprep.subr.mxu0 0.0
        %853 = vmatpush1.msra.mxu0 0.0
        %854 = vmatprep.subr.mxu0 0.0
        %855 = vmatpush1.msra.mxu0 0.0
        %856 = vmatprep.subr.mxu0 0.0
        %857 = vmatpush1.msra.mxu0 0.0
        %858 = vmatprep.subr.mxu0 0.0
        %859 = vmatpush1.msra.mxu0 0.0
        %860 = vmatprep.subr.mxu0 0.0
        %861 = vmatpush1.msra.mxu0 0.0
        %862 = vmatprep.subr.mxu0 0.0
        %863 = vmatpush1.msra.mxu0 0.0
        %864 = vmatprep.subr.mxu0 0.0
        %865 = vmatpush1.msra.mxu0 0.0
        %866 = vmatprep.subr.mxu0 0.0
        %867 = vmatpush1.msra.mxu0 0.0
        %868 = vmatprep.subr.mxu0 0.0
        %869 = vmatpush1.msra.mxu0 0.0
        %870 = vmatprep.subr.mxu0 0.0
        %871 = vmatpush1.msra.mxu0 %v804
        %872 = vmatprep.subr.mxu0 0.0
        %873 = vmatpush1.msra.mxu0 %v700
        %874 = vmatprep.subr.mxu0 0.0
        %875 = vmatpush1.msra.mxu0 %v596
        %876 = vmatprep.subr.mxu0 0.0
        %877 = vmatpush1.msra.mxu0 %v492
        %878 = vmatprep.subr.mxu0 0.0
        %879 = vmatpush2.msra.mxu0 0.0
        %880 = vmatprep.subr.mxu0 0.0
        %881 = vmatpush2.msra.mxu0 0.0
        %882 = vmatprep.subr.mxu0 0.0
        %883 = vmatpush2.msra.mxu0 0.0
        %884 = vmatprep.subr.mxu0 0.0
        %885 = vmatpush2.msra.mxu0 0.0
        %886 = vmatprep.subr.mxu0 0.0
        %887 = vmatpush2.msra.mxu0 0.0
        %888 = vmatprep.subr.mxu0 0.0
        %889 = vmatpush2.msra.mxu0 0.0
        %890 = vmatprep.subr.mxu0 0.0
        %891 = vmatpush2.msra.mxu0 0.0
        %892 = vmatprep.subr.mxu0 0.0
        %893 = vmatpush2.msra.mxu0 0.0
        %894 = vmatprep.subr.mxu0 0.0
        %895 = vmatpush2.msra.mxu0 0.0
        %896 = vmatprep.subr.mxu0 0.0
        %897 = vmatpush2.msra.mxu0 0.0
        %898 = vmatprep.subr.mxu0 0.0
        %899 = vmatpush2.msra.mxu0 0.0
        %900 = vmatprep.subr.mxu0 0.0
        %901 = vmatpush2.msra.mxu0 0.0
        %902 = vmatprep.subr.mxu0 0.0
        %903 = vmatpush2.msra.mxu0 0.0
        %904 = vmatprep.subr.mxu0 0.0
        %905 = vmatpush2.msra.mxu0 0.0
        %906 = vmatprep.subr.mxu0 0.0
        %907 = vmatpush2.msra.mxu0 0.0
        %908 = vmatprep.subr.mxu0 0.0
        %909 = vmatpush2.msra.mxu0 0.0
        %910 = vmatprep.mubr.f32.mxu0 0.0
        %911 = vmatmul.mubr.f32.gmra.mxu0 %v835
        %v912 = vpop.f32.mrf.mxu0
        %v913 = vadd.f32 %v816, %v912
        %v914 = vpop.f32.mrf.mxu0
        %915 = vmatprep.mubr.f32.mxu0 0.0
        %916 = vmatmul.mubr.f32.gmra.mxu0 %v838
        %v917 = vpop.f32.mrf.mxu0
        %v918 = vadd.f32 %v821, %v917
        %v919 = vpop.f32.mrf.mxu0
        %920 = vmatprep.mubr.f32.mxu0 0.0
        %921 = vmatmul.mubr.f32.gmra.mxu0 %v841
        %v922 = vpop.f32.mrf.mxu0
        %v923 = vadd.f32 %v826, %v922
        %v924 = vpop.f32.mrf.mxu0
        %925 = vmatprep.mubr.f32.mxu0 0.0
        %926 = vmatmul.mubr.f32.gmra.mxu0 %v844
        %v927 = vpop.f32.mrf.mxu0
        %v928 = vadd.f32 %v831, %v927
        %v929 = vpop.f32.mrf.mxu0
        %930 = vdwg.mxu0
        %v931 = vand.u32 2147483647, %v913
        %vm932 = vcmp.le.f32.partialorder %v931, 0.7853982
        %vm933 = vcmp.lt.s32.totalorder %v913, 0
        %v934 = vand.u32 %v913, 2139095040
        %v935 = vshrl.u32 %v934, 23
        %v936 = vsub.s32 %v935, 127
        %v937 = vand.u32 2147483647, %v913
        %v938 = vand.u32 %v937, 8388607
        %v939 = vor.u32 %v938, 8388608
        %v940 = vsub.s32 0, %v939
        %v941 = vadd.s32 %v936, 1
        %vm942 = vcmp.gt.s32.totalorder %v941, 0
        %v943 = vsel %vm942, %v941, 0
        %v944 = vshrl.u32 %v943, 5
        %v945 = vand.u32 %v943, 31
        %v946 = vsub.s32 32, %v945
        %v947 = vshrl.u32 683565275, %v946
        %v948 = vshll.u32 683565275, %v945
        %v949 = vshrl.u32 2475754826, %v946
        %v950 = vor.u32 %v948, %v949
        %v951 = vshll.u32 2475754826, %v945
        %v952 = vshrl.u32 2131351028, %v946
        %v953 = vor.u32 %v951, %v952
        %v954 = vshll.u32 2131351028, %v945
        %v955 = vshrl.u32 2102212464, %v946
        %v956 = vor.u32 %v954, %v955
        %v957 = vshll.u32 2102212464, %v945
        %v958 = vshrl.u32 920167782, %v946
        %v959 = vor.u32 %v957, %v958
        %v960 = vshll.u32 920167782, %v945
        %v961 = vshrl.u32 1326507024, %v946
        %v962 = vor.u32 %v960, %v961
        %vm963 = vcmp.lt.s32.totalorder %v944, 1
        %vm964 = vcmp.lt.s32.totalorder %v944, 2
        %vm965 = vcmp.lt.s32.totalorder %v944, 3
        %vm966 = vcmp.lt.s32.totalorder %v944, 4
        %v967 = vsel %vm963, %v947, %v950
        %v968 = vsel %vm966, %v956, 2102212464
        %v969 = vsel %vm965, %v953, %v968
        %v970 = vsel %vm964, %v967, %v969
        %v971 = vsel %vm963, %v950, %v953
        %v972 = vsel %vm966, %v959, 920167782
        %v973 = vsel %vm965, %v956, %v972
        %v974 = vsel %vm964, %v971, %v973
        %v975 = vsel %vm963, %v953, %v956
        %v976 = vsel %vm966, %v962, 1326507024
        %v977 = vsel %vm965, %v959, %v976
        %v978 = vsel %vm964, %v975, %v977
        %v979 = vshll.u32 %v939, 8
        %v980 = vmul.u32.u64.compose %v979, %v978
        %v981 = vextract.low.u32 %v980
        %v982 = vextract.high.u32 %v980
        %v983 = vmul.u32.u64.compose %v979, %v974
        %v984 = vextract.low.u32 %v983
        %v985 = vextract.high.u32 %v983
        %v986 = vmul.u32 %v979, %v970
        %v987 = vadd.s32 %v982, %v984
        %vm988 = vc.u32 %v982, %v984
        %v989 = vadd.s32 %v985, 1
        %v990 = vsel %vm988, %v989, %v985
        %v991 = vadd.s32 %v986, %v990
        %v992 = vadd.s32 %v991, 536870912
        %v993 = vshrl.u32 %v992, 30
        %v994 = vshll.u32 %v993, 30
        %v995 = vsub.s32 %v991, %v994
        %vm996 = vcmp.lt.s32.totalorder %v995, 0
        %v997 = vsub.s32 0, %v995
        %v998 = vsel %vm996, %v997, %v995
        %v999 = vclz %v998
        %v1000 = vsub.s32 %v999, 2
        %vm1001 = vcmp.gt.s32.totalorder 0, %v1000
        %v1002 = vsel %vm1001, 0, %v1000
        %v1003 = vsub.s32 32, %v1002
        %v1004 = vshll.u32 %v995, %v1002
        %v1005 = vshrl.u32 %v987, %v1003
        %v1006 = vor.u32 %v1004, %v1005
        %v1007 = vsub.s32 4294967266, %v1002
        %v1008 = vadd.s32 %v1007, 127
        %v1009 = vshll.u32 %v1008, 23
        %v1010 = vor.u32 4788187, %v1009
        %v1011 = vand.u32 2147483647, %v1010
        %v1013 = vcvt.s32.f32 %v1006
        %v1014 = vmul.f32 %v1013, %v1011
        %v1015 = vxor.u32 %v1014, 2147483648
        %v1016 = vsel %vm933, %v1015, %v1014
        %v1017 = vsub.s32 4, %v993
        %v1018 = vsel %vm933, %v1017, %v993
        %v1019 = vsel %vm932, %v913, %v1016
        %v1020 = vsel %vm932, 0, %v1018
        %v1021 = vcosq.f32.pop %v1019
        %v1022 = vsinq.f32.pop %v1019
        %vm1023 = vweird.f32 %v913
        %v1024 = vadd.s32 %v1020, 3
        %v1025 = vand.u32 %v1024, 3
        %vm1026 = vcmp.lt.s32.totalorder %v1025, 2
        %vm1027 = vcmp.eq.s32.totalorder %v1025, 0
        %v1028 = vxor.u32 %v1022, 2147483648
        %v1029 = vsel %vm1027, %v1021, %v1028
        %vm1030 = vcmp.eq.s32.totalorder %v1025, 2
        %v1031 = vxor.u32 %v1021, 2147483648
        %v1032 = vsel %vm1030, %v1031, %v1022
        %v1033 = vsel %vm1026, %v1029, %v1032
        %v1034 = vsel %vm1023, nan, %v1033
        %v1035 = vand.u32 2147483647, %v918
        %vm1036 = vcmp.le.f32.partialorder %v1035, 0.7853982
        %vm1037 = vcmp.lt.s32.totalorder %v918, 0
        %v1038 = vand.u32 %v918, 2139095040
        %v1039 = vshrl.u32 %v1038, 23
        %v1040 = vsub.s32 %v1039, 127
        %v1041 = vand.u32 2147483647, %v918
        %v1042 = vand.u32 %v1041, 8388607
        %v1043 = vor.u32 %v1042, 8388608
        %v1044 = vsub.s32 0, %v1043
        %v1045 = vadd.s32 %v1040, 1
        %vm1046 = vcmp.gt.s32.totalorder %v1045, 0
        %v1047 = vsel %vm1046, %v1045, 0
        %v1048 = vshrl.u32 %v1047, 5
        %v1049 = vand.u32 %v1047, 31
        %v1050 = vsub.s32 32, %v1049
        %v1051 = vshrl.u32 683565275, %v1050
        %v1052 = vshll.u32 683565275, %v1049
        %v1053 = vshrl.u32 2475754826, %v1050
        %v1054 = vor.u32 %v1052, %v1053
        %v1055 = vshll.u32 2475754826, %v1049
        %v1056 = vshrl.u32 2131351028, %v1050
        %v1057 = vor.u32 %v1055, %v1056
        %v1058 = vshll.u32 2131351028, %v1049
        %v1059 = vshrl.u32 2102212464, %v1050
        %v1060 = vor.u32 %v1058, %v1059
        %v1061 = vshll.u32 2102212464, %v1049
        %v1062 = vshrl.u32 920167782, %v1050
        %v1063 = vor.u32 %v1061, %v1062
        %v1064 = vshll.u32 920167782, %v1049
        %v1065 = vshrl.u32 1326507024, %v1050
        %v1066 = vor.u32 %v1064, %v1065
        %vm1067 = vcmp.lt.s32.totalorder %v1048, 1
        %vm1068 = vcmp.lt.s32.totalorder %v1048, 2
        %vm1069 = vcmp.lt.s32.totalorder %v1048, 3
        %vm1070 = vcmp.lt.s32.totalorder %v1048, 4
        %v1071 = vsel %vm1067, %v1051, %v1054
        %v1072 = vsel %vm1070, %v1060, 2102212464
        %v1073 = vsel %vm1069, %v1057, %v1072
        %v1074 = vsel %vm1068, %v1071, %v1073
        %v1075 = vsel %vm1067, %v1054, %v1057
        %v1076 = vsel %vm1070, %v1063, 920167782
        %v1077 = vsel %vm1069, %v1060, %v1076
        %v1078 = vsel %vm1068, %v1075, %v1077
        %v1079 = vsel %vm1067, %v1057, %v1060
        %v1080 = vsel %vm1070, %v1066, 1326507024
        %v1081 = vsel %vm1069, %v1063, %v1080
        %v1082 = vsel %vm1068, %v1079, %v1081
        %v1083 = vshll.u32 %v1043, 8
        %v1084 = vmul.u32.u64.compose %v1083, %v1082
        %v1085 = vextract.low.u32 %v1084
        %v1086 = vextract.high.u32 %v1084
        %v1087 = vmul.u32.u64.compose %v1083, %v1078
        %v1088 = vextract.low.u32 %v1087
        %v1089 = vextract.high.u32 %v1087
        %v1090 = vmul.u32 %v1083, %v1074
        %v1091 = vadd.s32 %v1086, %v1088
        %vm1092 = vc.u32 %v1086, %v1088
        %v1093 = vadd.s32 %v1089, 1
        %v1094 = vsel %vm1092, %v1093, %v1089
        %v1095 = vadd.s32 %v1090, %v1094
        %v1096 = vadd.s32 %v1095, 536870912
        %v1097 = vshrl.u32 %v1096, 30
        %v1098 = vshll.u32 %v1097, 30
        %v1099 = vsub.s32 %v1095, %v1098
        %vm1100 = vcmp.lt.s32.totalorder %v1099, 0
        %v1101 = vsub.s32 0, %v1099
        %v1102 = vsel %vm1100, %v1101, %v1099
        %v1103 = vclz %v1102
        %v1104 = vsub.s32 %v1103, 2
        %vm1105 = vcmp.gt.s32.totalorder 0, %v1104
        %v1106 = vsel %vm1105, 0, %v1104
        %v1107 = vsub.s32 32, %v1106
        %v1108 = vshll.u32 %v1099, %v1106
        %v1109 = vshrl.u32 %v1091, %v1107
        %v1110 = vor.u32 %v1108, %v1109
        %v1111 = vsub.s32 4294967266, %v1106
        %v1112 = vadd.s32 %v1111, 127
        %v1113 = vshll.u32 %v1112, 23
        %v1114 = vor.u32 4788187, %v1113
        %v1115 = vand.u32 2147483647, %v1114
        %v1117 = vcvt.s32.f32 %v1110
        %v1118 = vmul.f32 %v1117, %v1115
        %v1119 = vxor.u32 %v1118, 2147483648
        %v1120 = vsel %vm1037, %v1119, %v1118
        %v1121 = vsub.s32 4, %v1097
        %v1122 = vsel %vm1037, %v1121, %v1097
        %v1123 = vsel %vm1036, %v918, %v1120
        %v1124 = vsel %vm1036, 0, %v1122
        %v1125 = vcosq.f32.pop %v1123
        %v1126 = vsinq.f32.pop %v1123
        %vm1127 = vweird.f32 %v918
        %v1128 = vadd.s32 %v1124, 3
        %v1129 = vand.u32 %v1128, 3
        %vm1130 = vcmp.lt.s32.totalorder %v1129, 2
        %vm1131 = vcmp.eq.s32.totalorder %v1129, 0
        %v1132 = vxor.u32 %v1126, 2147483648
        %v1133 = vsel %vm1131, %v1125, %v1132
        %vm1134 = vcmp.eq.s32.totalorder %v1129, 2
        %v1135 = vxor.u32 %v1125, 2147483648
        %v1136 = vsel %vm1134, %v1135, %v1126
        %v1137 = vsel %vm1130, %v1133, %v1136
        %v1138 = vsel %vm1127, nan, %v1137
        %v1139 = vand.u32 2147483647, %v923
        %vm1140 = vcmp.le.f32.partialorder %v1139, 0.7853982
        %vm1141 = vcmp.lt.s32.totalorder %v923, 0
        %v1142 = vand.u32 %v923, 2139095040
        %v1143 = vshrl.u32 %v1142, 23
        %v1144 = vsub.s32 %v1143, 127
        %v1145 = vand.u32 2147483647, %v923
        %v1146 = vand.u32 %v1145, 8388607
        %v1147 = vor.u32 %v1146, 8388608
        %v1148 = vsub.s32 0, %v1147
        %v1149 = vadd.s32 %v1144, 1
        %vm1150 = vcmp.gt.s32.totalorder %v1149, 0
        %v1151 = vsel %vm1150, %v1149, 0
        %v1152 = vshrl.u32 %v1151, 5
        %v1153 = vand.u32 %v1151, 31
        %v1154 = vsub.s32 32, %v1153
        %v1155 = vshrl.u32 683565275, %v1154
        %v1156 = vshll.u32 683565275, %v1153
        %v1157 = vshrl.u32 2475754826, %v1154
        %v1158 = vor.u32 %v1156, %v1157
        %v1159 = vshll.u32 2475754826, %v1153
        %v1160 = vshrl.u32 2131351028, %v1154
        %v1161 = vor.u32 %v1159, %v1160
        %v1162 = vshll.u32 2131351028, %v1153
        %v1163 = vshrl.u32 2102212464, %v1154
        %v1164 = vor.u32 %v1162, %v1163
        %v1165 = vshll.u32 2102212464, %v1153
        %v1166 = vshrl.u32 920167782, %v1154
        %v1167 = vor.u32 %v1165, %v1166
        %v1168 = vshll.u32 920167782, %v1153
        %v1169 = vshrl.u32 1326507024, %v1154
        %v1170 = vor.u32 %v1168, %v1169
        %vm1171 = vcmp.lt.s32.totalorder %v1152, 1
        %vm1172 = vcmp.lt.s32.totalorder %v1152, 2
        %vm1173 = vcmp.lt.s32.totalorder %v1152, 3
        %vm1174 = vcmp.lt.s32.totalorder %v1152, 4
        %v1175 = vsel %vm1171, %v1155, %v1158
        %v1176 = vsel %vm1174, %v1164, 2102212464
        %v1177 = vsel %vm1173, %v1161, %v1176
        %v1178 = vsel %vm1172, %v1175, %v1177
        %v1179 = vsel %vm1171, %v1158, %v1161
        %v1180 = vsel %vm1174, %v1167, 920167782
        %v1181 = vsel %vm1173, %v1164, %v1180
        %v1182 = vsel %vm1172, %v1179, %v1181
        %v1183 = vsel %vm1171, %v1161, %v1164
        %v1184 = vsel %vm1174, %v1170, 1326507024
        %v1185 = vsel %vm1173, %v1167, %v1184
        %v1186 = vsel %vm1172, %v1183, %v1185
        %v1187 = vshll.u32 %v1147, 8
        %v1188 = vmul.u32.u64.compose %v1187, %v1186
        %v1189 = vextract.low.u32 %v1188
        %v1190 = vextract.high.u32 %v1188
        %v1191 = vmul.u32.u64.compose %v1187, %v1182
        %v1192 = vextract.low.u32 %v1191
        %v1193 = vextract.high.u32 %v1191
        %v1194 = vmul.u32 %v1187, %v1178
        %v1195 = vadd.s32 %v1190, %v1192
        %vm1196 = vc.u32 %v1190, %v1192
        %v1197 = vadd.s32 %v1193, 1
        %v1198 = vsel %vm1196, %v1197, %v1193
        %v1199 = vadd.s32 %v1194, %v1198
        %v1200 = vadd.s32 %v1199, 536870912
        %v1201 = vshrl.u32 %v1200, 30
        %v1202 = vshll.u32 %v1201, 30
        %v1203 = vsub.s32 %v1199, %v1202
        %vm1204 = vcmp.lt.s32.totalorder %v1203, 0
        %v1205 = vsub.s32 0, %v1203
        %v1206 = vsel %vm1204, %v1205, %v1203
        %v1207 = vclz %v1206
        %v1208 = vsub.s32 %v1207, 2
        %vm1209 = vcmp.gt.s32.totalorder 0, %v1208
        %v1210 = vsel %vm1209, 0, %v1208
        %v1211 = vsub.s32 32, %v1210
        %v1212 = vshll.u32 %v1203, %v1210
        %v1213 = vshrl.u32 %v1195, %v1211
        %v1214 = vor.u32 %v1212, %v1213
        %v1215 = vsub.s32 4294967266, %v1210
        %v1216 = vadd.s32 %v1215, 127
        %v1217 = vshll.u32 %v1216, 23
        %v1218 = vor.u32 4788187, %v1217
        %v1219 = vand.u32 2147483647, %v1218
        %v1221 = vcvt.s32.f32 %v1214
        %v1222 = vmul.f32 %v1221, %v1219
        %v1223 = vxor.u32 %v1222, 2147483648
        %v1224 = vsel %vm1141, %v1223, %v1222
        %v1225 = vsub.s32 4, %v1201
        %v1226 = vsel %vm1141, %v1225, %v1201
        %v1227 = vsel %vm1140, %v923, %v1224
        %v1228 = vsel %vm1140, 0, %v1226
        %v1229 = vcosq.f32.pop %v1227
        %v1230 = vsinq.f32.pop %v1227
        %vm1231 = vweird.f32 %v923
        %v1232 = vadd.s32 %v1228, 3
        %v1233 = vand.u32 %v1232, 3
        %vm1234 = vcmp.lt.s32.totalorder %v1233, 2
        %vm1235 = vcmp.eq.s32.totalorder %v1233, 0
        %v1236 = vxor.u32 %v1230, 2147483648
        %v1237 = vsel %vm1235, %v1229, %v1236
        %vm1238 = vcmp.eq.s32.totalorder %v1233, 2
        %v1239 = vxor.u32 %v1229, 2147483648
        %v1240 = vsel %vm1238, %v1239, %v1230
        %v1241 = vsel %vm1234, %v1237, %v1240
        %v1242 = vsel %vm1231, nan, %v1241
        %v1243 = vand.u32 2147483647, %v928
        %vm1244 = vcmp.le.f32.partialorder %v1243, 0.7853982
        %vm1245 = vcmp.lt.s32.totalorder %v928, 0
        %v1246 = vand.u32 %v928, 2139095040
        %v1247 = vshrl.u32 %v1246, 23
        %v1248 = vsub.s32 %v1247, 127
        %v1249 = vand.u32 2147483647, %v928
        %v1250 = vand.u32 %v1249, 8388607
        %v1251 = vor.u32 %v1250, 8388608
        %v1252 = vsub.s32 0, %v1251
        %v1253 = vadd.s32 %v1248, 1
        %vm1254 = vcmp.gt.s32.totalorder %v1253, 0
        %v1255 = vsel %vm1254, %v1253, 0
        %v1256 = vshrl.u32 %v1255, 5
        %v1257 = vand.u32 %v1255, 31
        %v1258 = vsub.s32 32, %v1257
        %v1259 = vshrl.u32 683565275, %v1258
        %v1260 = vshll.u32 683565275, %v1257
        %v1261 = vshrl.u32 2475754826, %v1258
        %v1262 = vor.u32 %v1260, %v1261
        %v1263 = vshll.u32 2475754826, %v1257
        %v1264 = vshrl.u32 2131351028, %v1258
        %v1265 = vor.u32 %v1263, %v1264
        %v1266 = vshll.u32 2131351028, %v1257
        %v1267 = vshrl.u32 2102212464, %v1258
        %v1268 = vor.u32 %v1266, %v1267
        %v1269 = vshll.u32 2102212464, %v1257
        %v1270 = vshrl.u32 920167782, %v1258
        %v1271 = vor.u32 %v1269, %v1270
        %v1272 = vshll.u32 920167782, %v1257
        %v1273 = vshrl.u32 1326507024, %v1258
        %v1274 = vor.u32 %v1272, %v1273
        %vm1275 = vcmp.lt.s32.totalorder %v1256, 1
        %vm1276 = vcmp.lt.s32.totalorder %v1256, 2
        %vm1277 = vcmp.lt.s32.totalorder %v1256, 3
        %vm1278 = vcmp.lt.s32.totalorder %v1256, 4
        %v1279 = vsel %vm1275, %v1259, %v1262
        %v1280 = vsel %vm1278, %v1268, 2102212464
        %v1281 = vsel %vm1277, %v1265, %v1280
        %v1282 = vsel %vm1276, %v1279, %v1281
        %v1283 = vsel %vm1275, %v1262, %v1265
        %v1284 = vsel %vm1278, %v1271, 920167782
        %v1285 = vsel %vm1277, %v1268, %v1284
        %v1286 = vsel %vm1276, %v1283, %v1285
        %v1287 = vsel %vm1275, %v1265, %v1268
        %v1288 = vsel %vm1278, %v1274, 1326507024
        %v1289 = vsel %vm1277, %v1271, %v1288
        %v1290 = vsel %vm1276, %v1287, %v1289
        %v1291 = vshll.u32 %v1251, 8
        %v1292 = vmul.u32.u64.compose %v1291, %v1290
        %v1293 = vextract.low.u32 %v1292
        %v1294 = vextract.high.u32 %v1292
        %v1295 = vmul.u32.u64.compose %v1291, %v1286
        %v1296 = vextract.low.u32 %v1295
        %v1297 = vextract.high.u32 %v1295
        %v1298 = vmul.u32 %v1291, %v1282
        %v1299 = vadd.s32 %v1294, %v1296
        %vm1300 = vc.u32 %v1294, %v1296
        %v1301 = vadd.s32 %v1297, 1
        %v1302 = vsel %vm1300, %v1301, %v1297
        %v1303 = vadd.s32 %v1298, %v1302
        %v1304 = vadd.s32 %v1303, 536870912
        %v1305 = vshrl.u32 %v1304, 30
        %v1306 = vshll.u32 %v1305, 30
        %v1307 = vsub.s32 %v1303, %v1306
        %vm1308 = vcmp.lt.s32.totalorder %v1307, 0
        %v1309 = vsub.s32 0, %v1307
        %v1310 = vsel %vm1308, %v1309, %v1307
        %v1311 = vclz %v1310
        %v1312 = vsub.s32 %v1311, 2
        %vm1313 = vcmp.gt.s32.totalorder 0, %v1312
        %v1314 = vsel %vm1313, 0, %v1312
        %v1315 = vsub.s32 32, %v1314
        %v1316 = vshll.u32 %v1307, %v1314
        %v1317 = vshrl.u32 %v1299, %v1315
        %v1318 = vor.u32 %v1316, %v1317
        %v1319 = vsub.s32 4294967266, %v1314
        %v1320 = vadd.s32 %v1319, 127
        %v1321 = vshll.u32 %v1320, 23
        %v1322 = vor.u32 4788187, %v1321
        %v1323 = vand.u32 2147483647, %v1322
        %v1325 = vcvt.s32.f32 %v1318
        %v1326 = vmul.f32 %v1325, %v1323
        %v1327 = vxor.u32 %v1326, 2147483648
        %v1328 = vsel %vm1245, %v1327, %v1326
        %v1329 = vsub.s32 4, %v1305
        %v1330 = vsel %vm1245, %v1329, %v1305
        %v1331 = vsel %vm1244, %v928, %v1328
        %v1332 = vsel %vm1244, 0, %v1330
        %v1333 = vcosq.f32.pop %v1331
        %v1334 = vsinq.f32.pop %v1331
        %vm1335 = vweird.f32 %v928
        %v1336 = vadd.s32 %v1332, 3
        %v1337 = vand.u32 %v1336, 3
        %vm1338 = vcmp.lt.s32.totalorder %v1337, 2
        %vm1339 = vcmp.eq.s32.totalorder %v1337, 0
        %v1340 = vxor.u32 %v1334, 2147483648
        %v1341 = vsel %vm1339, %v1333, %v1340
        %vm1342 = vcmp.eq.s32.totalorder %v1337, 2
        %v1343 = vxor.u32 %v1333, 2147483648
        %v1344 = vsel %vm1342, %v1343, %v1334
        %v1345 = vsel %vm1338, %v1341, %v1344
        %v1346 = vsel %vm1335, nan, %v1345
        %v1347 = vld [vmem:[%s4] sm:$0xff]
        %v1348 = vld [vmem:[%s4 + $0x8] sm:$0xff]
        %v1349 = vld [vmem:[%s4 + $0x10] sm:$0xff]
        %v1350 = vld [vmem:[%s4 + $0x18] sm:$0xff]
        %v1351 = vld [vmem:[%s5] sm:$0xff]
        %v1352 = vld [vmem:[%s5 + $0x8] sm:$0xff]
        %v1353 = vld [vmem:[%s5 + $0x10] sm:$0xff]
        %v1354 = vld [vmem:[%s5 + $0x18] sm:$0xff]
        %1356 = vset.pattern.permute.xlu0 0
        %1357 = vperm.xlu0 %1356, %v1351
        %v1358 = vpop.permute.xlu0 %1357
        %1361 = vset.pattern.permute.xlu0 0
        %1362 = vperm.xlu0 %1361, %v1352
        %v1363 = vpop.permute.xlu0 %1362
        %1366 = vset.pattern.permute.xlu0 0
        %1367 = vperm.xlu0 %1366, %v1353
        %v1368 = vpop.permute.xlu0 %1367
        %1371 = vset.pattern.permute.xlu0 0
        %1372 = vperm.xlu0 %1371, %v1354
        %v1373 = vpop.permute.xlu0 %1372
        %v1376 = vsel %vm833, %v1347, 0
        %v1379 = vsel %vm833, %v1348, 0
        %v1382 = vsel %vm833, %v1349, 0
        %v1385 = vsel %vm833, %v1350, 0
        %1387 = vmatprep.subr.mxu0 0.0
        %1388 = vmatpush1.msra.mxu0 0.0
        %1389 = vmatprep.subr.mxu0 0.0
        %1390 = vmatpush1.msra.mxu0 0.0
        %1391 = vmatprep.subr.mxu0 0.0
        %1392 = vmatpush1.msra.mxu0 0.0
        %1393 = vmatprep.subr.mxu0 0.0
        %1394 = vmatpush1.msra.mxu0 0.0
        %1395 = vmatprep.subr.mxu0 0.0
        %1396 = vmatpush1.msra.mxu0 0.0
        %1397 = vmatprep.subr.mxu0 0.0
        %1398 = vmatpush1.msra.mxu0 0.0
        %1399 = vmatprep.subr.mxu0 0.0
        %1400 = vmatpush1.msra.mxu0 0.0
        %1401 = vmatprep.subr.mxu0 0.0
        %1402 = vmatpush1.msra.mxu0 0.0
        %1403 = vmatprep.subr.mxu0 0.0
        %1404 = vmatpush1.msra.mxu0 0.0
        %1405 = vmatprep.subr.mxu0 0.0
        %1406 = vmatpush1.msra.mxu0 0.0
        %1407 = vmatprep.subr.mxu0 0.0
        %1408 = vmatpush1.msra.mxu0 0.0
        %1409 = vmatprep.subr.mxu0 0.0
        %1410 = vmatpush1.msra.mxu0 0.0
        %1411 = vmatprep.subr.mxu0 0.0
        %1412 = vmatpush1.msra.mxu0 %v1346
        %1413 = vmatprep.subr.mxu0 0.0
        %1414 = vmatpush1.msra.mxu0 %v1242
        %1415 = vmatprep.subr.mxu0 0.0
        %1416 = vmatpush1.msra.mxu0 %v1138
        %1417 = vmatprep.subr.mxu0 0.0
        %1418 = vmatpush1.msra.mxu0 %v1034
        %1419 = vmatprep.subr.mxu0 0.0
        %1420 = vmatpush2.msra.mxu0 0.0
        %1421 = vmatprep.subr.mxu0 0.0
        %1422 = vmatpush2.msra.mxu0 0.0
        %1423 = vmatprep.subr.mxu0 0.0
        %1424 = vmatpush2.msra.mxu0 0.0
        %1425 = vmatprep.subr.mxu0 0.0
        %1426 = vmatpush2.msra.mxu0 0.0
        %1427 = vmatprep.subr.mxu0 0.0
        %1428 = vmatpush2.msra.mxu0 0.0
        %1429 = vmatprep.subr.mxu0 0.0
        %1430 = vmatpush2.msra.mxu0 0.0
        %1431 = vmatprep.subr.mxu0 0.0
        %1432 = vmatpush2.msra.mxu0 0.0
        %1433 = vmatprep.subr.mxu0 0.0
        %1434 = vmatpush2.msra.mxu0 0.0
        %1435 = vmatprep.subr.mxu0 0.0
        %1436 = vmatpush2.msra.mxu0 0.0
        %1437 = vmatprep.subr.mxu0 0.0
        %1438 = vmatpush2.msra.mxu0 0.0
        %1439 = vmatprep.subr.mxu0 0.0
        %1440 = vmatpush2.msra.mxu0 0.0
        %1441 = vmatprep.subr.mxu0 0.0
        %1442 = vmatpush2.msra.mxu0 0.0
        %1443 = vmatprep.subr.mxu0 0.0
        %1444 = vmatpush2.msra.mxu0 0.0
        %1445 = vmatprep.subr.mxu0 0.0
        %1446 = vmatpush2.msra.mxu0 0.0
        %1447 = vmatprep.subr.mxu0 0.0
        %1448 = vmatpush2.msra.mxu0 0.0
        %1449 = vmatprep.subr.mxu0 0.0
        %1450 = vmatpush2.msra.mxu0 0.0
        %1451 = vmatprep.mubr.f32.mxu0 0.0
        %1452 = vmatmul.mubr.f32.gmra.mxu0 %v1376
        %v1453 = vpop.f32.mrf.mxu0
        %v1454 = vadd.f32 %v1358, %v1453
        %v1455 = vpop.f32.mrf.mxu0
        %1456 = vmatprep.mubr.f32.mxu0 0.0
        %1457 = vmatmul.mubr.f32.gmra.mxu0 %v1379
        %v1458 = vpop.f32.mrf.mxu0
        %v1459 = vadd.f32 %v1363, %v1458
        %v1460 = vpop.f32.mrf.mxu0
        %1461 = vmatprep.mubr.f32.mxu0 0.0
        %1462 = vmatmul.mubr.f32.gmra.mxu0 %v1382
        %v1463 = vpop.f32.mrf.mxu0
        %v1464 = vadd.f32 %v1368, %v1463
        %v1465 = vpop.f32.mrf.mxu0
        %1466 = vmatprep.mubr.f32.mxu0 0.0
        %1467 = vmatmul.mubr.f32.gmra.mxu0 %v1385
        %v1468 = vpop.f32.mrf.mxu0
        %v1469 = vadd.f32 %v1373, %v1468
        %v1470 = vpop.f32.mrf.mxu0
        %1471 = vdwg.mxu0
        %v1472 = vand.u32 2147483647, %v1454
        %vm1473 = vcmp.le.f32.partialorder %v1472, 0.7853982
        %vm1474 = vcmp.lt.s32.totalorder %v1454, 0
        %v1475 = vand.u32 %v1454, 2139095040
        %v1476 = vshrl.u32 %v1475, 23
        %v1477 = vsub.s32 %v1476, 127
        %v1478 = vand.u32 2147483647, %v1454
        %v1479 = vand.u32 %v1478, 8388607
        %v1480 = vor.u32 %v1479, 8388608
        %v1481 = vsub.s32 0, %v1480
        %v1482 = vadd.s32 %v1477, 1
        %vm1483 = vcmp.gt.s32.totalorder %v1482, 0
        %v1484 = vsel %vm1483, %v1482, 0
        %v1485 = vshrl.u32 %v1484, 5
        %v1486 = vand.u32 %v1484, 31
        %v1487 = vsub.s32 32, %v1486
        %v1488 = vshrl.u32 683565275, %v1487
        %v1489 = vshll.u32 683565275, %v1486
        %v1490 = vshrl.u32 2475754826, %v1487
        %v1491 = vor.u32 %v1489, %v1490
        %v1492 = vshll.u32 2475754826, %v1486
        %v1493 = vshrl.u32 2131351028, %v1487
        %v1494 = vor.u32 %v1492, %v1493
        %v1495 = vshll.u32 2131351028, %v1486
        %v1496 = vshrl.u32 2102212464, %v1487
        %v1497 = vor.u32 %v1495, %v1496
        %v1498 = vshll.u32 2102212464, %v1486
        %v1499 = vshrl.u32 920167782, %v1487
        %v1500 = vor.u32 %v1498, %v1499
        %v1501 = vshll.u32 920167782, %v1486
        %v1502 = vshrl.u32 1326507024, %v1487
        %v1503 = vor.u32 %v1501, %v1502
        %vm1504 = vcmp.lt.s32.totalorder %v1485, 1
        %vm1505 = vcmp.lt.s32.totalorder %v1485, 2
        %vm1506 = vcmp.lt.s32.totalorder %v1485, 3
        %vm1507 = vcmp.lt.s32.totalorder %v1485, 4
        %v1508 = vsel %vm1504, %v1488, %v1491
        %v1509 = vsel %vm1507, %v1497, 2102212464
        %v1510 = vsel %vm1506, %v1494, %v1509
        %v1511 = vsel %vm1505, %v1508, %v1510
        %v1512 = vsel %vm1504, %v1491, %v1494
        %v1513 = vsel %vm1507, %v1500, 920167782
        %v1514 = vsel %vm1506, %v1497, %v1513
        %v1515 = vsel %vm1505, %v1512, %v1514
        %v1516 = vsel %vm1504, %v1494, %v1497
        %v1517 = vsel %vm1507, %v1503, 1326507024
        %v1518 = vsel %vm1506, %v1500, %v1517
        %v1519 = vsel %vm1505, %v1516, %v1518
        %v1520 = vshll.u32 %v1480, 8
        %v1521 = vmul.u32.u64.compose %v1520, %v1519
        %v1522 = vextract.low.u32 %v1521
        %v1523 = vextract.high.u32 %v1521
        %v1524 = vmul.u32.u64.compose %v1520, %v1515
        %v1525 = vextract.low.u32 %v1524
        %v1526 = vextract.high.u32 %v1524
        %v1527 = vmul.u32 %v1520, %v1511
        %v1528 = vadd.s32 %v1523, %v1525
        %vm1529 = vc.u32 %v1523, %v1525
        %v1530 = vadd.s32 %v1526, 1
        %v1531 = vsel %vm1529, %v1530, %v1526
        %v1532 = vadd.s32 %v1527, %v1531
        %v1533 = vadd.s32 %v1532, 536870912
        %v1534 = vshrl.u32 %v1533, 30
        %v1535 = vshll.u32 %v1534, 30
        %v1536 = vsub.s32 %v1532, %v1535
        %vm1537 = vcmp.lt.s32.totalorder %v1536, 0
        %v1538 = vsub.s32 0, %v1536
        %v1539 = vsel %vm1537, %v1538, %v1536
        %v1540 = vclz %v1539
        %v1541 = vsub.s32 %v1540, 2
        %vm1542 = vcmp.gt.s32.totalorder 0, %v1541
        %v1543 = vsel %vm1542, 0, %v1541
        %v1544 = vsub.s32 32, %v1543
        %v1545 = vshll.u32 %v1536, %v1543
        %v1546 = vshrl.u32 %v1528, %v1544
        %v1547 = vor.u32 %v1545, %v1546
        %v1548 = vsub.s32 4294967266, %v1543
        %v1549 = vadd.s32 %v1548, 127
        %v1550 = vshll.u32 %v1549, 23
        %v1551 = vor.u32 4788187, %v1550
        %v1552 = vand.u32 2147483647, %v1551
        %v1554 = vcvt.s32.f32 %v1547
        %v1555 = vmul.f32 %v1554, %v1552
        %v1556 = vxor.u32 %v1555, 2147483648
        %v1557 = vsel %vm1474, %v1556, %v1555
        %v1558 = vsub.s32 4, %v1534
        %v1559 = vsel %vm1474, %v1558, %v1534
        %v1560 = vsel %vm1473, %v1454, %v1557
        %v1561 = vsel %vm1473, 0, %v1559
        %v1562 = vcosq.f32.pop %v1560
        %v1563 = vsinq.f32.pop %v1560
        %vm1564 = vweird.f32 %v1454
        %v1565 = vadd.s32 %v1561, 3
        %v1566 = vand.u32 %v1565, 3
        %vm1567 = vcmp.lt.s32.totalorder %v1566, 2
        %vm1568 = vcmp.eq.s32.totalorder %v1566, 0
        %v1569 = vxor.u32 %v1563, 2147483648
        %v1570 = vsel %vm1568, %v1562, %v1569
        %vm1571 = vcmp.eq.s32.totalorder %v1566, 2
        %v1572 = vxor.u32 %v1562, 2147483648
        %v1573 = vsel %vm1571, %v1572, %v1563
        %v1574 = vsel %vm1567, %v1570, %v1573
        %v1575 = vsel %vm1564, nan, %v1574
        %v1576 = vand.u32 2147483647, %v1459
        %vm1577 = vcmp.le.f32.partialorder %v1576, 0.7853982
        %vm1578 = vcmp.lt.s32.totalorder %v1459, 0
        %v1579 = vand.u32 %v1459, 2139095040
        %v1580 = vshrl.u32 %v1579, 23
        %v1581 = vsub.s32 %v1580, 127
        %v1582 = vand.u32 2147483647, %v1459
        %v1583 = vand.u32 %v1582, 8388607
        %v1584 = vor.u32 %v1583, 8388608
        %v1585 = vsub.s32 0, %v1584
        %v1586 = vadd.s32 %v1581, 1
        %vm1587 = vcmp.gt.s32.totalorder %v1586, 0
        %v1588 = vsel %vm1587, %v1586, 0
        %v1589 = vshrl.u32 %v1588, 5
        %v1590 = vand.u32 %v1588, 31
        %v1591 = vsub.s32 32, %v1590
        %v1592 = vshrl.u32 683565275, %v1591
        %v1593 = vshll.u32 683565275, %v1590
        %v1594 = vshrl.u32 2475754826, %v1591
        %v1595 = vor.u32 %v1593, %v1594
        %v1596 = vshll.u32 2475754826, %v1590
        %v1597 = vshrl.u32 2131351028, %v1591
        %v1598 = vor.u32 %v1596, %v1597
        %v1599 = vshll.u32 2131351028, %v1590
        %v1600 = vshrl.u32 2102212464, %v1591
        %v1601 = vor.u32 %v1599, %v1600
        %v1602 = vshll.u32 2102212464, %v1590
        %v1603 = vshrl.u32 920167782, %v1591
        %v1604 = vor.u32 %v1602, %v1603
        %v1605 = vshll.u32 920167782, %v1590
        %v1606 = vshrl.u32 1326507024, %v1591
        %v1607 = vor.u32 %v1605, %v1606
        %vm1608 = vcmp.lt.s32.totalorder %v1589, 1
        %vm1609 = vcmp.lt.s32.totalorder %v1589, 2
        %vm1610 = vcmp.lt.s32.totalorder %v1589, 3
        %vm1611 = vcmp.lt.s32.totalorder %v1589, 4
        %v1612 = vsel %vm1608, %v1592, %v1595
        %v1613 = vsel %vm1611, %v1601, 2102212464
        %v1614 = vsel %vm1610, %v1598, %v1613
        %v1615 = vsel %vm1609, %v1612, %v1614
        %v1616 = vsel %vm1608, %v1595, %v1598
        %v1617 = vsel %vm1611, %v1604, 920167782
        %v1618 = vsel %vm1610, %v1601, %v1617
        %v1619 = vsel %vm1609, %v1616, %v1618
        %v1620 = vsel %vm1608, %v1598, %v1601
        %v1621 = vsel %vm1611, %v1607, 1326507024
        %v1622 = vsel %vm1610, %v1604, %v1621
        %v1623 = vsel %vm1609, %v1620, %v1622
        %v1624 = vshll.u32 %v1584, 8
        %v1625 = vmul.u32.u64.compose %v1624, %v1623
        %v1626 = vextract.low.u32 %v1625
        %v1627 = vextract.high.u32 %v1625
        %v1628 = vmul.u32.u64.compose %v1624, %v1619
        %v1629 = vextract.low.u32 %v1628
        %v1630 = vextract.high.u32 %v1628
        %v1631 = vmul.u32 %v1624, %v1615
        %v1632 = vadd.s32 %v1627, %v1629
        %vm1633 = vc.u32 %v1627, %v1629
        %v1634 = vadd.s32 %v1630, 1
        %v1635 = vsel %vm1633, %v1634, %v1630
        %v1636 = vadd.s32 %v1631, %v1635
        %v1637 = vadd.s32 %v1636, 536870912
        %v1638 = vshrl.u32 %v1637, 30
        %v1639 = vshll.u32 %v1638, 30
        %v1640 = vsub.s32 %v1636, %v1639
        %vm1641 = vcmp.lt.s32.totalorder %v1640, 0
        %v1642 = vsub.s32 0, %v1640
        %v1643 = vsel %vm1641, %v1642, %v1640
        %v1644 = vclz %v1643
        %v1645 = vsub.s32 %v1644, 2
        %vm1646 = vcmp.gt.s32.totalorder 0, %v1645
        %v1647 = vsel %vm1646, 0, %v1645
        %v1648 = vsub.s32 32, %v1647
        %v1649 = vshll.u32 %v1640, %v1647
        %v1650 = vshrl.u32 %v1632, %v1648
        %v1651 = vor.u32 %v1649, %v1650
        %v1652 = vsub.s32 4294967266, %v1647
        %v1653 = vadd.s32 %v1652, 127
        %v1654 = vshll.u32 %v1653, 23
        %v1655 = vor.u32 4788187, %v1654
        %v1656 = vand.u32 2147483647, %v1655
        %v1658 = vcvt.s32.f32 %v1651
        %v1659 = vmul.f32 %v1658, %v1656
        %v1660 = vxor.u32 %v1659, 2147483648
        %v1661 = vsel %vm1578, %v1660, %v1659
        %v1662 = vsub.s32 4, %v1638
        %v1663 = vsel %vm1578, %v1662, %v1638
        %v1664 = vsel %vm1577, %v1459, %v1661
        %v1665 = vsel %vm1577, 0, %v1663
        %v1666 = vcosq.f32.pop %v1664
        %v1667 = vsinq.f32.pop %v1664
        %vm1668 = vweird.f32 %v1459
        %v1669 = vadd.s32 %v1665, 3
        %v1670 = vand.u32 %v1669, 3
        %vm1671 = vcmp.lt.s32.totalorder %v1670, 2
        %vm1672 = vcmp.eq.s32.totalorder %v1670, 0
        %v1673 = vxor.u32 %v1667, 2147483648
        %v1674 = vsel %vm1672, %v1666, %v1673
        %vm1675 = vcmp.eq.s32.totalorder %v1670, 2
        %v1676 = vxor.u32 %v1666, 2147483648
        %v1677 = vsel %vm1675, %v1676, %v1667
        %v1678 = vsel %vm1671, %v1674, %v1677
        %v1679 = vsel %vm1668, nan, %v1678
        %v1680 = vand.u32 2147483647, %v1464
        %vm1681 = vcmp.le.f32.partialorder %v1680, 0.7853982
        %vm1682 = vcmp.lt.s32.totalorder %v1464, 0
        %v1683 = vand.u32 %v1464, 2139095040
        %v1684 = vshrl.u32 %v1683, 23
        %v1685 = vsub.s32 %v1684, 127
        %v1686 = vand.u32 2147483647, %v1464
        %v1687 = vand.u32 %v1686, 8388607
        %v1688 = vor.u32 %v1687, 8388608
        %v1689 = vsub.s32 0, %v1688
        %v1690 = vadd.s32 %v1685, 1
        %vm1691 = vcmp.gt.s32.totalorder %v1690, 0
        %v1692 = vsel %vm1691, %v1690, 0
        %v1693 = vshrl.u32 %v1692, 5
        %v1694 = vand.u32 %v1692, 31
        %v1695 = vsub.s32 32, %v1694
        %v1696 = vshrl.u32 683565275, %v1695
        %v1697 = vshll.u32 683565275, %v1694
        %v1698 = vshrl.u32 2475754826, %v1695
        %v1699 = vor.u32 %v1697, %v1698
        %v1700 = vshll.u32 2475754826, %v1694
        %v1701 = vshrl.u32 2131351028, %v1695
        %v1702 = vor.u32 %v1700, %v1701
        %v1703 = vshll.u32 2131351028, %v1694
        %v1704 = vshrl.u32 2102212464, %v1695
        %v1705 = vor.u32 %v1703, %v1704
        %v1706 = vshll.u32 2102212464, %v1694
        %v1707 = vshrl.u32 920167782, %v1695
        %v1708 = vor.u32 %v1706, %v1707
        %v1709 = vshll.u32 920167782, %v1694
        %v1710 = vshrl.u32 1326507024, %v1695
        %v1711 = vor.u32 %v1709, %v1710
        %vm1712 = vcmp.lt.s32.totalorder %v1693, 1
        %vm1713 = vcmp.lt.s32.totalorder %v1693, 2
        %vm1714 = vcmp.lt.s32.totalorder %v1693, 3
        %vm1715 = vcmp.lt.s32.totalorder %v1693, 4
        %v1716 = vsel %vm1712, %v1696, %v1699
        %v1717 = vsel %vm1715, %v1705, 2102212464
        %v1718 = vsel %vm1714, %v1702, %v1717
        %v1719 = vsel %vm1713, %v1716, %v1718
        %v1720 = vsel %vm1712, %v1699, %v1702
        %v1721 = vsel %vm1715, %v1708, 920167782
        %v1722 = vsel %vm1714, %v1705, %v1721
        %v1723 = vsel %vm1713, %v1720, %v1722
        %v1724 = vsel %vm1712, %v1702, %v1705
        %v1725 = vsel %vm1715, %v1711, 1326507024
        %v1726 = vsel %vm1714, %v1708, %v1725
        %v1727 = vsel %vm1713, %v1724, %v1726
        %v1728 = vshll.u32 %v1688, 8
        %v1729 = vmul.u32.u64.compose %v1728, %v1727
        %v1730 = vextract.low.u32 %v1729
        %v1731 = vextract.high.u32 %v1729
        %v1732 = vmul.u32.u64.compose %v1728, %v1723
        %v1733 = vextract.low.u32 %v1732
        %v1734 = vextract.high.u32 %v1732
        %v1735 = vmul.u32 %v1728, %v1719
        %v1736 = vadd.s32 %v1731, %v1733
        %vm1737 = vc.u32 %v1731, %v1733
        %v1738 = vadd.s32 %v1734, 1
        %v1739 = vsel %vm1737, %v1738, %v1734
        %v1740 = vadd.s32 %v1735, %v1739
        %v1741 = vadd.s32 %v1740, 536870912
        %v1742 = vshrl.u32 %v1741, 30
        %v1743 = vshll.u32 %v1742, 30
        %v1744 = vsub.s32 %v1740, %v1743
        %vm1745 = vcmp.lt.s32.totalorder %v1744, 0
        %v1746 = vsub.s32 0, %v1744
        %v1747 = vsel %vm1745, %v1746, %v1744
        %v1748 = vclz %v1747
        %v1749 = vsub.s32 %v1748, 2
        %vm1750 = vcmp.gt.s32.totalorder 0, %v1749
        %v1751 = vsel %vm1750, 0, %v1749
        %v1752 = vsub.s32 32, %v1751
        %v1753 = vshll.u32 %v1744, %v1751
        %v1754 = vshrl.u32 %v1736, %v1752
        %v1755 = vor.u32 %v1753, %v1754
        %v1756 = vsub.s32 4294967266, %v1751
        %v1757 = vadd.s32 %v1756, 127
        %v1758 = vshll.u32 %v1757, 23
        %v1759 = vor.u32 4788187, %v1758
        %v1760 = vand.u32 2147483647, %v1759
        %v1762 = vcvt.s32.f32 %v1755
        %v1763 = vmul.f32 %v1762, %v1760
        %v1764 = vxor.u32 %v1763, 2147483648
        %v1765 = vsel %vm1682, %v1764, %v1763
        %v1766 = vsub.s32 4, %v1742
        %v1767 = vsel %vm1682, %v1766, %v1742
        %v1768 = vsel %vm1681, %v1464, %v1765
        %v1769 = vsel %vm1681, 0, %v1767
        %v1770 = vcosq.f32.pop %v1768
        %v1771 = vsinq.f32.pop %v1768
        %vm1772 = vweird.f32 %v1464
        %v1773 = vadd.s32 %v1769, 3
        %v1774 = vand.u32 %v1773, 3
        %vm1775 = vcmp.lt.s32.totalorder %v1774, 2
        %vm1776 = vcmp.eq.s32.totalorder %v1774, 0
        %v1777 = vxor.u32 %v1771, 2147483648
        %v1778 = vsel %vm1776, %v1770, %v1777
        %vm1779 = vcmp.eq.s32.totalorder %v1774, 2
        %v1780 = vxor.u32 %v1770, 2147483648
        %v1781 = vsel %vm1779, %v1780, %v1771
        %v1782 = vsel %vm1775, %v1778, %v1781
        %v1783 = vsel %vm1772, nan, %v1782
        %v1784 = vand.u32 2147483647, %v1469
        %vm1785 = vcmp.le.f32.partialorder %v1784, 0.7853982
        %vm1786 = vcmp.lt.s32.totalorder %v1469, 0
        %v1787 = vand.u32 %v1469, 2139095040
        %v1788 = vshrl.u32 %v1787, 23
        %v1789 = vsub.s32 %v1788, 127
        %v1790 = vand.u32 2147483647, %v1469
        %v1791 = vand.u32 %v1790, 8388607
        %v1792 = vor.u32 %v1791, 8388608
        %v1793 = vsub.s32 0, %v1792
        %v1794 = vadd.s32 %v1789, 1
        %vm1795 = vcmp.gt.s32.totalorder %v1794, 0
        %v1796 = vsel %vm1795, %v1794, 0
        %v1797 = vshrl.u32 %v1796, 5
        %v1798 = vand.u32 %v1796, 31
        %v1799 = vsub.s32 32, %v1798
        %v1800 = vshrl.u32 683565275, %v1799
        %v1801 = vshll.u32 683565275, %v1798
        %v1802 = vshrl.u32 2475754826, %v1799
        %v1803 = vor.u32 %v1801, %v1802
        %v1804 = vshll.u32 2475754826, %v1798
        %v1805 = vshrl.u32 2131351028, %v1799
        %v1806 = vor.u32 %v1804, %v1805
        %v1807 = vshll.u32 2131351028, %v1798
        %v1808 = vshrl.u32 2102212464, %v1799
        %v1809 = vor.u32 %v1807, %v1808
        %v1810 = vshll.u32 2102212464, %v1798
        %v1811 = vshrl.u32 920167782, %v1799
        %v1812 = vor.u32 %v1810, %v1811
        %v1813 = vshll.u32 920167782, %v1798
        %v1814 = vshrl.u32 1326507024, %v1799
        %v1815 = vor.u32 %v1813, %v1814
        %vm1816 = vcmp.lt.s32.totalorder %v1797, 1
        %vm1817 = vcmp.lt.s32.totalorder %v1797, 2
        %vm1818 = vcmp.lt.s32.totalorder %v1797, 3
        %vm1819 = vcmp.lt.s32.totalorder %v1797, 4
        %v1820 = vsel %vm1816, %v1800, %v1803
        %v1821 = vsel %vm1819, %v1809, 2102212464
        %v1822 = vsel %vm1818, %v1806, %v1821
        %v1823 = vsel %vm1817, %v1820, %v1822
        %v1824 = vsel %vm1816, %v1803, %v1806
        %v1825 = vsel %vm1819, %v1812, 920167782
        %v1826 = vsel %vm1818, %v1809, %v1825
        %v1827 = vsel %vm1817, %v1824, %v1826
        %v1828 = vsel %vm1816, %v1806, %v1809
        %v1829 = vsel %vm1819, %v1815, 1326507024
        %v1830 = vsel %vm1818, %v1812, %v1829
        %v1831 = vsel %vm1817, %v1828, %v1830
        %v1832 = vshll.u32 %v1792, 8
        %v1833 = vmul.u32.u64.compose %v1832, %v1831
        %v1834 = vextract.low.u32 %v1833
        %v1835 = vextract.high.u32 %v1833
        %v1836 = vmul.u32.u64.compose %v1832, %v1827
        %v1837 = vextract.low.u32 %v1836
        %v1838 = vextract.high.u32 %v1836
        %v1839 = vmul.u32 %v1832, %v1823
        %v1840 = vadd.s32 %v1835, %v1837
        %vm1841 = vc.u32 %v1835, %v1837
        %v1842 = vadd.s32 %v1838, 1
        %v1843 = vsel %vm1841, %v1842, %v1838
        %v1844 = vadd.s32 %v1839, %v1843
        %v1845 = vadd.s32 %v1844, 536870912
        %v1846 = vshrl.u32 %v1845, 30
        %v1847 = vshll.u32 %v1846, 30
        %v1848 = vsub.s32 %v1844, %v1847
        %vm1849 = vcmp.lt.s32.totalorder %v1848, 0
        %v1850 = vsub.s32 0, %v1848
        %v1851 = vsel %vm1849, %v1850, %v1848
        %v1852 = vclz %v1851
        %v1853 = vsub.s32 %v1852, 2
        %vm1854 = vcmp.gt.s32.totalorder 0, %v1853
        %v1855 = vsel %vm1854, 0, %v1853
        %v1856 = vsub.s32 32, %v1855
        %v1857 = vshll.u32 %v1848, %v1855
        %v1858 = vshrl.u32 %v1840, %v1856
        %v1859 = vor.u32 %v1857, %v1858
        %v1860 = vsub.s32 4294967266, %v1855
        %v1861 = vadd.s32 %v1860, 127
        %v1862 = vshll.u32 %v1861, 23
        %v1863 = vor.u32 4788187, %v1862
        %v1864 = vand.u32 2147483647, %v1863
        %v1866 = vcvt.s32.f32 %v1859
        %v1867 = vmul.f32 %v1866, %v1864
        %v1868 = vxor.u32 %v1867, 2147483648
        %v1869 = vsel %vm1786, %v1868, %v1867
        %v1870 = vsub.s32 4, %v1846
        %v1871 = vsel %vm1786, %v1870, %v1846
        %v1872 = vsel %vm1785, %v1469, %v1869
        %v1873 = vsel %vm1785, 0, %v1871
        %v1874 = vcosq.f32.pop %v1872
        %v1875 = vsinq.f32.pop %v1872
        %vm1876 = vweird.f32 %v1469
        %v1877 = vadd.s32 %v1873, 3
        %v1878 = vand.u32 %v1877, 3
        %vm1879 = vcmp.lt.s32.totalorder %v1878, 2
        %vm1880 = vcmp.eq.s32.totalorder %v1878, 0
        %v1881 = vxor.u32 %v1875, 2147483648
        %v1882 = vsel %vm1880, %v1874, %v1881
        %vm1883 = vcmp.eq.s32.totalorder %v1878, 2
        %v1884 = vxor.u32 %v1874, 2147483648
        %v1885 = vsel %vm1883, %v1884, %v1875
        %v1886 = vsel %vm1879, %v1882, %v1885
        %v1887 = vsel %vm1876, nan, %v1886
        %v1888 = vld [vmem:[%s6] sm:$0xff]
        %v1889 = vld [vmem:[%s7] sm:$0xff]
        %1891 = vset.pattern.permute.xlu0 0
        %1892 = vperm.xlu0 %1891, %v1889
        %v1893 = vpop.permute.xlu0 %1892
        %v1896 = vsel %vm833, %v1888, 0
        %1898 = vmatprep.subr.mxu0 0.0
        %1899 = vmatpush1.msra.mxu0 0.0
        %1900 = vmatprep.subr.mxu0 0.0
        %1901 = vmatpush1.msra.mxu0 0.0
        %1902 = vmatprep.subr.mxu0 0.0
        %1903 = vmatpush1.msra.mxu0 0.0
        %1904 = vmatprep.subr.mxu0 0.0
        %1905 = vmatpush1.msra.mxu0 0.0
        %1906 = vmatprep.subr.mxu0 0.0
        %1907 = vmatpush1.msra.mxu0 0.0
        %1908 = vmatprep.subr.mxu0 0.0
        %1909 = vmatpush1.msra.mxu0 0.0
        %1910 = vmatprep.subr.mxu0 0.0
        %1911 = vmatpush1.msra.mxu0 0.0
        %1912 = vmatprep.subr.mxu0 0.0
        %1913 = vmatpush1.msra.mxu0 0.0
        %1914 = vmatprep.subr.mxu0 0.0
        %1915 = vmatpush1.msra.mxu0 0.0
        %1916 = vmatprep.subr.mxu0 0.0
        %1917 = vmatpush1.msra.mxu0 0.0
        %1918 = vmatprep.subr.mxu0 0.0
        %1919 = vmatpush1.msra.mxu0 0.0
        %1920 = vmatprep.subr.mxu0 0.0
        %1921 = vmatpush1.msra.mxu0 0.0
        %1922 = vmatprep.subr.mxu0 0.0
        %1923 = vmatpush1.msra.mxu0 %v1887
        %1924 = vmatprep.subr.mxu0 0.0
        %1925 = vmatpush1.msra.mxu0 %v1783
        %1926 = vmatprep.subr.mxu0 0.0
        %1927 = vmatpush1.msra.mxu0 %v1679
        %1928 = vmatprep.subr.mxu0 0.0
        %1929 = vmatpush1.msra.mxu0 %v1575
        %1930 = vmatprep.subr.mxu0 0.0
        %1931 = vmatpush2.msra.mxu0 0.0
        %1932 = vmatprep.subr.mxu0 0.0
        %1933 = vmatpush2.msra.mxu0 0.0
        %1934 = vmatprep.subr.mxu0 0.0
        %1935 = vmatpush2.msra.mxu0 0.0
        %1936 = vmatprep.subr.mxu0 0.0
        %1937 = vmatpush2.msra.mxu0 0.0
        %1938 = vmatprep.subr.mxu0 0.0
        %1939 = vmatpush2.msra.mxu0 0.0
        %1940 = vmatprep.subr.mxu0 0.0
        %1941 = vmatpush2.msra.mxu0 0.0
        %1942 = vmatprep.subr.mxu0 0.0
        %1943 = vmatpush2.msra.mxu0 0.0
        %1944 = vmatprep.subr.mxu0 0.0
        %1945 = vmatpush2.msra.mxu0 0.0
        %1946 = vmatprep.subr.mxu0 0.0
        %1947 = vmatpush2.msra.mxu0 0.0
        %1948 = vmatprep.subr.mxu0 0.0
        %1949 = vmatpush2.msra.mxu0 0.0
        %1950 = vmatprep.subr.mxu0 0.0
        %1951 = vmatpush2.msra.mxu0 0.0
        %1952 = vmatprep.subr.mxu0 0.0
        %1953 = vmatpush2.msra.mxu0 0.0
        %1954 = vmatprep.subr.mxu0 0.0
        %1955 = vmatpush2.msra.mxu0 0.0
        %1956 = vmatprep.subr.mxu0 0.0
        %1957 = vmatpush2.msra.mxu0 0.0
        %1958 = vmatprep.subr.mxu0 0.0
        %1959 = vmatpush2.msra.mxu0 0.0
        %1960 = vmatprep.subr.mxu0 0.0
        %1961 = vmatpush2.msra.mxu0 0.0
        %1962 = vmatprep.mubr.f32.mxu0 0.0
        %1963 = vmatmul.mubr.f32.gmra.mxu0 %v1896
        %v1964 = vpop.f32.mrf.mxu0
        %v1965 = vadd.f32 %v1893, %v1964
        %v1966 = vpop.f32.mrf.mxu0
        %1967 = vdwg.mxu0
        %1968 = vst [vmem:[%s283] sm:$0xff] %v1965
        %s1969 = sand.u32 %s198, 1
        %s1970 = scalar_lea.sflag [#allocation3], %s1969
        %s1971 = sand.u32 %s198, 1
        %s1972 = smul.addr %s1971, 8
        %s1973 = scalar_lea.vmem [#allocation2], %s1972
        // Predicated region
        $region53: #{tpu_custom_call.1} parent=51 // pred_check
          %p1974 = pneg %p208
        $region54: #{tpu_custom_call.1} parent=51 // pred_check_branch
          %1976 = sbr.rel (%p1974) target = $region56
        $region55: #{tpu_custom_call.1} parent=51 // pred_region
          %s1978 = ssub.s32 128, 128
          %1979 = vsyncadd %s1970, %s1978
          %s1980 = smul.addr %s22, 128
          %s1981 = scalar_lea.hbm %s8, %s1980
          %s1983 = sshll.u32 %s1973, 4
          %s1984 = int_to_ptr.vmem [resolvable:$true] %s1983
          %1986 = dma.vmem_to_hbm [thread:$0]  %s1984, 128, %s1981, %s1970
        $region56: #{tpu_custom_call.1} parent=51 // pred_fallthru
          _
      $region52: #{tpu_custom_call.1} parent=5 // pred_fallthru
        _
      %p1987 = scmp.le.s32.totalorder 2, %s17
      // Predicated region
      $region57: #{tpu_custom_call.1} parent=5 // pred_check
        %p1988 = pneg %p1987
      $region58: #{tpu_custom_call.1} parent=5 // pred_check_branch
        %1990 = sbr.rel (%p1988) target = $region60
      $region59: #{tpu_custom_call.1} parent=5 // pred_region
        %s1991 = ssub.s32 %s17, 2
        // Predicated region
        $region61: #{tpu_custom_call.1} parent=59 // pred_check
          %p1992 = pneg %p214
        $region62: #{tpu_custom_call.1} parent=59 // pred_check_branch
          %1994 = sbr.rel (%p1992) target = $region64
        $region63: #{tpu_custom_call.1} parent=59 // pred_region
          %s1995 = sand.u32 %s199, 1
          %s1996 = scalar_lea.sflag [#allocation3], %s1995
          %s1997 = sand.u32 %s199, 1
          %s1998 = smul.addr %s1997, 8
          %s1999 = scalar_lea.vmem [#allocation2], %s1998
          %2000 = dma.done %s1996, 128
        $region64: #{tpu_custom_call.1} parent=59 // pred_fallthru
          _
      $region60: #{tpu_custom_call.1} parent=5 // pred_fallthru
        _
    $region6: #{tpu_custom_call.1} parent=1 // loop_footer
      %s21 = sadd.s32 1, %s17
    $region7: #{tpu_custom_call.1} parent=1 // loop_footer_branch
      %16 = sbr.rel target = $region3
    $region8: #{tpu_custom_call.1} parent=1 // loop_exit
      _
    %2001 = vsyncpa [#allocation3], 1
    %s2002 = scalar_lea.sflag [#allocation3], 1
    %2003 = vsyncpa %s2002, 1

</llo_original>
